<compile_context>
chip_gen: v5e
topology: v5e:2x2
jax: 0.10.0
libtpu: 0.0.40
codegen_flags: <defaults>
</compile_context>

<pallas_src>
import functools

import jax
import jax.numpy as jnp
import numpy as np
from jax import lax
from jax.experimental import pallas as pl
from jax.experimental.pallas import tpu as pltpu

H = 32   # hidden_size
O = 64   # output_size (vocab)
L = 16   # max_length (small for demo; module default is 200)

LANE = 128
# Packed weight slab: lane-aligned segments (all column offsets are multiples
# of 128 and all widths are 128 or 256, zero-padded).
A0 = 0 * LANE      # seg A (128): emb -> [w_attn_e(L) | w_comb_e(H)]        + bias
B0 = 1 * LANE      # seg B (256): hid -> [w_attn_h(L) | w_hh r,z,n(3H) | w_out(O)] + bias
C0 = 3 * LANE      # seg C (128): x   -> [w_ih r,z,n(3H)]                   + bias
D0 = 4 * LANE      # seg D (128): enc -> [w_comb_h(H)]  (combine weight, assoc.)
SLAB_W = 5 * LANE
SLAB_ROWS = H + 8  # rows 0..H-1 weights, row H = fused bias row, rest padding

OUT_W = LANE       # per-step packed output row: [logp(O) | h(H) | attn(L) | pad]
assert O + H + L <= OUT_W and L + 3 * H + O <= 2 * LANE and 3 * H <= LANE


def pack_params(p):
    """Pack all linear/GRU weights + biases into one lane-aligned f32 slab."""
    w_hh = jnp.concatenate([p["w_hh"][0], p["w_hh"][1], p["w_hh"][2]], axis=1)
    b_hh = jnp.concatenate([p["b_hh"][0], p["b_hh"][1], p["b_hh"][2]], axis=1)[0]
    w_ih = jnp.concatenate([p["w_ih"][0], p["w_ih"][1], p["w_ih"][2]], axis=1)
    b_ih = jnp.concatenate([p["b_ih"][0], p["b_ih"][1], p["b_ih"][2]], axis=1)[0]

    slab = jnp.zeros((SLAB_ROWS, SLAB_W), jnp.float32)
    # seg A: embedding projections (attention + combine), biases folded in once.
    slab = slab.at[:H, A0:A0 + L].set(p["w_attn"][:H])
    slab = slab.at[:H, A0 + L:A0 + L + H].set(p["w_comb"][:H])
    slab = slab.at[H, A0:A0 + L].set(p["b_attn"][0])
    slab = slab.at[H, A0 + L:A0 + L + H].set(p["b_comb"][0])
    # seg B: hidden projections fused with the output head.
    slab = slab.at[:H, B0:B0 + L].set(p["w_attn"][H:])
    slab = slab.at[:H, B0 + L:B0 + L + 3 * H].set(w_hh)
    slab = slab.at[:H, B0 + L + 3 * H:B0 + L + 3 * H + O].set(p["w_out"])
    slab = slab.at[H, B0 + L:B0 + L + 3 * H].set(b_hh)
    slab = slab.at[H, B0 + L + 3 * H:B0 + L + 3 * H + O].set(p["b_out"][0])
    # seg C: GRU input-hidden weights.
    slab = slab.at[:H, C0:C0 + 3 * H].set(w_ih)
    slab = slab.at[H, C0:C0 + 3 * H].set(b_ih)
    # seg D: combine weight applied to encoder outputs (associativity).
    slab = slab.at[:H, D0:D0 + H].set(p["w_comb"][H:])
    return slab


def decoder_kernel(tok_ref,                       # SMEM (T,) int32 (scalar prefetch)
                   h0_ref, enc_ref, emb_ref, slab_ref,   # VMEM resident inputs
                   out_ref,                       # VMEM (T, 128) packed outputs
                   emb_scr, fe_scr,               # VMEM scratch
                   *, T):
    f32 = jnp.float32

    def W(c0, w):
        return slab_ref[0:H, c0:c0 + w]

    def Bv(c0, w):
        return slab_ref[H:H + 1, c0:c0 + w]

    # ---------- one-time precompute (off the serial recurrence path) ----------
    # Embedding gather for all T tokens.  Dropout = identity (eval mode).
    # TODO(synk): training-mode dropout (p=0.1) not implemented; eval semantics.
    @pl.loop(0, T)
    def _(i):
        emb_scr[pl.ds(i, 1), :] = emb_ref[pl.ds(tok_ref[i], 1), :].astype(f32)

    # FE[t] = emb_t @ [w_attn_e | w_comb_e] + [b_attn | b_comb]   -> (T, 128)
    fe_scr[...] = (jnp.dot(emb_scr[...], W(A0, LANE), preferred_element_type=f32)
                   + Bv(A0, LANE))

    # enc_proj = encoder_outputs @ w_comb_h    -> (L, 128) value, loop-invariant
    enc_proj = jnp.dot(enc_ref[...].astype(f32), W(D0, LANE),
                       preferred_element_type=f32)

    seg_b_w = W(B0, 2 * LANE)
    seg_b_b = Bv(B0, 2 * LANE)
    seg_c_w = W(C0, LANE)
    seg_c_b = Bv(C0, LANE)

    h0 = h0_ref[...].astype(f32)
    big0 = jnp.dot(h0, seg_b_w, preferred_element_type=f32) + seg_b_b  # (1, 256)

    # ----------------------------- recurrence ---------------------------------
    def step(t, carry):
        hid, big = carry                      # hid (1,H); big = hid @ segB + bias
        fe = fe_scr[pl.ds(t, 1), :]           # (1, 128)

        # attention = softmax(Linear(cat(emb, hid)))  -- exact division
        logits = fe[:, :L] + big[:, :L]
        e = jnp.exp(logits - jnp.max(logits, axis=1, keepdims=True))
        attn_w = e / jnp.sum(e, axis=1, keepdims=True)                  # (1, L)

        # attn_applied @ w_comb_h collapsed via associativity into one matmul.
        ap = jnp.dot(attn_w, enc_proj, preferred_element_type=f32)      # (1, 128)
        x = jnp.maximum(fe[:, L:L + H] + ap[:, :H], 0.0)                # relu

        # GRU cell (PyTorch gate order r, z, n); b_hh already folded into big.
        gi = jnp.dot(x, seg_c_w, preferred_element_type=f32) + seg_c_b  # (1, 128)
        gh = big[:, L:L + 3 * H]
        rz = jax.nn.sigmoid(gi[:, :2 * H] + gh[:, :2 * H])
        r = rz[:, :H]
        z = rz[:, H:2 * H]
        n = jnp.tanh(gi[:, 2 * H:3 * H] + r * gh[:, 2 * H:])
        h_new = (1.0 - z) * n + z * hid                                 # (1, H)

        # Fused hidden/output projection: one MXU pass yields this step's
        # output logits AND the next step's hidden projections (fh).
        big_new = jnp.dot(h_new, seg_b_w, preferred_element_type=f32) + seg_b_b
        o_logits = big_new[:, L + 3 * H:L + 3 * H + O]
        sh = o_logits - jnp.max(o_logits, axis=1, keepdims=True)
        logp = sh - jnp.log(jnp.sum(jnp.exp(sh), axis=1, keepdims=True))

        # Single unmasked lane-dense (1,128) store per step (all lanes written).
        row = jnp.concatenate(
            [logp, h_new, attn_w, jnp.zeros((1, OUT_W - O - H - L), f32)], axis=1)
        out_ref[pl.ds(t, 1), :] = row
        return h_new, big_new

    lax.fori_loop(0, T, step, (h0, big0), unroll=(T <= 16))


def attention_decoder_decode(tokens, hidden0, encoder_outputs, p):
    """Run the full T-step decode inside one kernel invocation.

    tokens: (T,) int32; hidden0: (1,1,H); encoder_outputs: (L,H).
    Returns per-step (log_probs (T,O), hidden (T,H), attn_weights (T,L)).
    """
    tokens = jnp.asarray(tokens, jnp.int32)
    T = int(tokens.shape[0])
    slab = pack_params(p)

    packed = pl.pallas_call(
        functools.partial(decoder_kernel, T=T),
        out_shape=jax.ShapeDtypeStruct((T, OUT_W), jnp.float32),
        grid_spec=pltpu.PrefetchScalarGridSpec(
            num_scalar_prefetch=1,
            grid=(1,),
            in_specs=[
                pl.BlockSpec((1, H), lambda i, tok: (0, 0)),            # h0
                pl.BlockSpec((L, H), lambda i, tok: (0, 0)),            # encoder outputs
                pl.BlockSpec((O, H), lambda i, tok: (0, 0)),            # embedding table
                pl.BlockSpec((SLAB_ROWS, SLAB_W), lambda i, tok: (0, 0)),  # weight slab
            ],
            out_specs=pl.BlockSpec((T, OUT_W), lambda i, tok: (0, 0)),
            scratch_shapes=[
                pltpu.VMEM((T, H), jnp.float32),       # gathered embeddings
                pltpu.VMEM((T, OUT_W), jnp.float32),   # FE = emb projections
            ],
        ),
        compiler_params=pltpu.CompilerParams(dimension_semantics=("arbitrary",)),
    )(tokens, hidden0[0], encoder_outputs, p["embedding"], slab)

    return packed[:, :O], packed[:, O:O + H], packed[:, O + H:O + H + L]


def attention_decoder_forward(token, hidden, encoder_outputs, p):
    """Single-step API matching the PyTorch forward: (1,O), (1,1,H), (1,L)."""
    out, hids, attn = attention_decoder_decode(
        jnp.asarray([token], jnp.int32), hidden, encoder_outputs, p)
    return out, hids[None, ...], attn


def reference_decode(tokens, hidden0, enc, p):
    h = hidden0[0]
    outs, hids, attns = [], [], []
    for tkn in np.asarray(tokens).tolist():
        emb = p["embedding"][tkn][None, :]
        cat = jnp.concatenate([emb, h], axis=1)
        attn_w = jax.nn.softmax(cat @ p["w_attn"] + p["b_attn"], axis=1)
        attn_applied = attn_w @ enc
        comb = jnp.concatenate([emb, attn_applied], axis=1) @ p["w_comb"] + p["b_comb"]
        x = jax.nn.relu(comb)
        i_r = x @ p["w_ih"][0] + p["b_ih"][0]
        i_z = x @ p["w_ih"][1] + p["b_ih"][1]
        i_n = x @ p["w_ih"][2] + p["b_ih"][2]
        h_r = h @ p["w_hh"][0] + p["b_hh"][0]
        h_z = h @ p["w_hh"][1] + p["b_hh"][1]
        h_n = h @ p["w_hh"][2] + p["b_hh"][2]
        r = jax.nn.sigmoid(i_r + h_r)
        z = jax.nn.sigmoid(i_z + h_z)
        n = jnp.tanh(i_n + r * h_n)
        h = (1.0 - z) * n + z * h
        out = jax.nn.log_softmax(h @ p["w_out"] + p["b_out"], axis=1)
        outs.append(out); hids.append(h); attns.append(attn_w)
    return (jnp.concatenate(outs, 0), jnp.concatenate(hids, 0),
            jnp.concatenate(attns, 0))


def make_params(key):
    ks = jax.random.split(key, 8)
    s = 0.1
    return {
        "embedding": s * jax.random.normal(ks[0], (O, H), jnp.float32),
        "w_attn":    s * jax.random.normal(ks[1], (2 * H, L), jnp.float32),
        "b_attn":    jnp.zeros((1, L), jnp.float32),
        "w_comb":    s * jax.random.normal(ks[2], (2 * H, H), jnp.float32),
        "b_comb":    jnp.zeros((1, H), jnp.float32),
        "w_ih":      s * jax.random.normal(ks[3], (3, H, H), jnp.float32),
        "b_ih":      s * jax.random.normal(ks[4], (3, 1, H), jnp.float32),
        "w_hh":      s * jax.random.normal(ks[5], (3, H, H), jnp.float32),
        "b_hh":      s * jax.random.normal(ks[6], (3, 1, H), jnp.float32),
        "w_out":     s * jax.random.normal(ks[7], (H, O), jnp.float32),
        "b_out":     jnp.zeros((1, O), jnp.float32),
    }


if __name__ == "__main__":
    key = jax.random.PRNGKey(0)
    kp, kh, ke, kt = jax.random.split(key, 4)
    params = make_params(kp)

    T = 8
    tokens = jax.random.randint(kt, (T,), 0, O, dtype=jnp.int32)
    hidden0 = jax.random.normal(kh, (1, 1, H), jnp.float32)        # GRU hidden state
    encoder_outputs = jax.random.normal(ke, (L, H), jnp.float32)   # (max_length, H)

    # Multi-step decode fully inside one kernel invocation.
    out, hids, attn = attention_decoder_decode(tokens, hidden0, encoder_outputs, params)
    jax.block_until_ready((out, hids, attn))

    ro, rh, ra = reference_decode(tokens, hidden0, encoder_outputs, params)
    assert out.shape == (T, O) and hids.shape == (T, H) and attn.shape == (T, L)
    np.testing.assert_allclose(np.asarray(out), np.asarray(ro), rtol=1e-4, atol=1e-4)
    np.testing.assert_allclose(np.asarray(hids), np.asarray(rh), rtol=1e-4, atol=1e-4)
    np.testing.assert_allclose(np.asarray(attn), np.asarray(ra), rtol=1e-4, atol=1e-4)

    # Single-step API matching the PyTorch module signature.
    o1, h1, a1 = attention_decoder_forward(int(tokens[0]), hidden0, encoder_outputs, params)
    jax.block_until_ready((o1, h1, a1))
    assert o1.shape == (1, O) and h1.shape == (1, 1, H) and a1.shape == (1, L)
    np.testing.assert_allclose(np.asarray(o1), np.asarray(out[0:1]), rtol=1e-5, atol=1e-5)
    np.testing.assert_allclose(np.asarray(h1[0]), np.asarray(hids[0:1]), rtol=1e-5, atol=1e-5)
    np.testing.assert_allclose(np.asarray(a1), np.asarray(attn[0:1]), rtol=1e-5, atol=1e-5)

    print("KERNEL_OK")
</pallas_src>

<mosaic_0001>
module attributes {stable_mosaic.version = 11 : i64} {
  func.func @decoder_kernel(%arg0: i32, %arg1: memref<8xi32, #tpu.memory_space<smem>>, %arg2: memref<1x32xf32, #tpu.memory_space<vmem>>, %arg3: memref<16x32xf32, #tpu.memory_space<vmem>>, %arg4: memref<64x32xf32, #tpu.memory_space<vmem>>, %arg5: memref<40x640xf32, #tpu.memory_space<vmem>>, %arg6: memref<8x128xf32, #tpu.memory_space<vmem>>, %arg7: memref<8x32xf32, #tpu.memory_space<vmem>>, %arg8: memref<8x128xf32, #tpu.memory_space<vmem>>) attributes {dimension_semantics = [#tpu.dimension_semantics<arbitrary>], iteration_bounds = array<i64: 1>, scalar_prefetch = 1 : i64, scratch_operands = 2 : i64, tpu.core_type = #tpu.core_type<tc>, window_params = [{pipeline_mode = #tpu.pipeline_mode<synchronous>, transform_indices = @transform_0, window_bounds = array<i64: 1, 32>}, {pipeline_mode = #tpu.pipeline_mode<synchronous>, transform_indices = @transform_1, window_bounds = array<i64: 16, 32>}, {pipeline_mode = #tpu.pipeline_mode<synchronous>, transform_indices = @transform_2, window_bounds = array<i64: 64, 32>}, {pipeline_mode = #tpu.pipeline_mode<synchronous>, transform_indices = @transform_3, window_bounds = array<i64: 40, 640>}, {pipeline_mode = #tpu.pipeline_mode<synchronous>, transform_indices = @transform_4, window_bounds = array<i64: 8, 128>}]} {
    %c0_i32 = arith.constant 0 : i32
    %c8_i32 = arith.constant 8 : i32
    %0 = arith.addi %c0_i32, %c8_i32 : i32
    %c1_i32 = arith.constant 1 : i32
    scf.for %arg9 = %c0_i32 to %0 step %c1_i32  : i32 {
      %c1_i32_127 = arith.constant 1 : i32
      %498 = arith.muli %arg9, %c1_i32_127 : i32
      %c0_i32_128 = arith.constant 0 : i32
      %499 = arith.addi %c0_i32_128, %498 : i32
      %500 = arith.index_cast %499 : i32 to index
      %501 = memref.load %arg1[%500] : memref<8xi32, #tpu.memory_space<smem>>
      %502 = arith.index_cast %501 : i32 to index
      %c0_129 = arith.constant 0 : index
      %503 = vector.load %arg4[%502, %c0_129] : memref<64x32xf32, #tpu.memory_space<vmem>>, vector<1x32xf32>
      %504 = arith.index_cast %499 : i32 to index
      %c0_130 = arith.constant 0 : index
      %505 = vector.load %arg7[%504, %c0_130] : memref<8x32xf32, #tpu.memory_space<vmem>>, vector<1x32xf32>
      tpu.vector_store %arg7[%504, %c0_130], %503 {strides = array<i32>} : memref<8x32xf32, #tpu.memory_space<vmem>>, vector<1x32xf32>,
    }
    %c8_i32_0 = arith.constant 8 : i32
    %c0 = arith.constant 0 : index
    %c0_1 = arith.constant 0 : index
    %1 = vector.load %arg7[%c0, %c0_1] : memref<8x32xf32, #tpu.memory_space<vmem>>, vector<8x32xf32>
    %c0_2 = arith.constant 0 : index
    %c0_3 = arith.constant 0 : index
    %2 = vector.load %arg5[%c0_2, %c0_3] : memref<40x640xf32, #tpu.memory_space<vmem>>, vector<32x128xf32>
    %cst = arith.constant dense<0.000000e+00> : vector<8x128xf32>
    %3 = tpu.matmul %1, %2, %cst {dimension_numbers = #tpu.dot_dimension_numbers<[1], [0], [0], [1], [0, 0, 1, 1], [], []>} : vector<8x32xf32>, vector<32x128xf32>, vector<8x128xf32> -> vector<8x128xf32>
    %c32 = arith.constant 32 : index
    %c0_4 = arith.constant 0 : index
    %4 = vector.load %arg5[%c32, %c0_4] : memref<40x640xf32, #tpu.memory_space<vmem>>, vector<1x128xf32>
    %5 = vector.broadcast %4 : vector<1x128xf32> to vector<8x128xf32>
    %6 = arith.addf %3, %5 : vector<8x128xf32>
    %c0_5 = arith.constant 0 : index
    %c0_6 = arith.constant 0 : index
    %7 = vector.load %arg8[%c0_5, %c0_6] : memref<8x128xf32, #tpu.memory_space<vmem>>, vector<8x128xf32>
    tpu.vector_store %arg8[%c0_5, %c0_6], %6 {strides = array<i32>} : memref<8x128xf32, #tpu.memory_space<vmem>>, vector<8x128xf32>,
    %c0_7 = arith.constant 0 : index
    %c0_8 = arith.constant 0 : index
    %8 = vector.load %arg3[%c0_7, %c0_8] : memref<16x32xf32, #tpu.memory_space<vmem>>, vector<16x32xf32>
    %c0_9 = arith.constant 0 : index
    %c512 = arith.constant 512 : index
    %9 = vector.load %arg5[%c0_9, %c512] : memref<40x640xf32, #tpu.memory_space<vmem>>, vector<32x128xf32>
    %cst_10 = arith.constant dense<0.000000e+00> : vector<16x128xf32>
    %10 = tpu.matmul %8, %9, %cst_10 {dimension_numbers = #tpu.dot_dimension_numbers<[1], [0], [0], [1], [0, 0, 1, 1], [], []>} : vector<16x32xf32>, vector<32x128xf32>, vector<16x128xf32> -> vector<16x128xf32>
    %c0_11 = arith.constant 0 : index
    %c128 = arith.constant 128 : index
    %11 = vector.load %arg5[%c0_11, %c128] : memref<40x640xf32, #tpu.memory_space<vmem>>, vector<32x256xf32>
    %c32_12 = arith.constant 32 : index
    %c128_13 = arith.constant 128 : index
    %12 = vector.load %arg5[%c32_12, %c128_13] : memref<40x640xf32, #tpu.memory_space<vmem>>, vector<1x256xf32>
    %c0_14 = arith.constant 0 : index
    %c384 = arith.constant 384 : index
    %13 = vector.load %arg5[%c0_14, %c384] : memref<40x640xf32, #tpu.memory_space<vmem>>, vector<32x128xf32>
    %c32_15 = arith.constant 32 : index
    %c384_16 = arith.constant 384 : index
    %14 = vector.load %arg5[%c32_15, %c384_16] : memref<40x640xf32, #tpu.memory_space<vmem>>, vector<1x128xf32>
    %c0_17 = arith.constant 0 : index
    %c0_18 = arith.constant 0 : index
    %15 = vector.load %arg2[%c0_17, %c0_18] : memref<1x32xf32, #tpu.memory_space<vmem>>, vector<1x32xf32>
    %cst_19 = arith.constant dense<0.000000e+00> : vector<1x256xf32>
    %16 = tpu.matmul %15, %11, %cst_19 {dimension_numbers = #tpu.dot_dimension_numbers<[1], [0], [0], [1], [0, 0, 1, 1], [], []>} : vector<1x32xf32>, vector<32x256xf32>, vector<1x256xf32> -> vector<1x256xf32>
    %17 = arith.addf %16, %12 : vector<1x256xf32>
    %c0_i32_20 = arith.constant 0 : i32
    %18 = arith.index_cast %c0_i32_20 : i32 to index
    %c0_21 = arith.constant 0 : index
    %19 = vector.load %arg8[%18, %c0_21] : memref<8x128xf32, #tpu.memory_space<vmem>>, vector<1x128xf32>
    %20 = vector.extract_strided_slice %19 {offsets = [0, 0], sizes = [1, 16], strides = [1, 1]} : vector<1x128xf32> to vector<1x16xf32>
    %21 = vector.extract_strided_slice %17 {offsets = [0, 0], sizes = [1, 16], strides = [1, 1]} : vector<1x256xf32> to vector<1x16xf32>
    %22 = arith.addf %20, %21 : vector<1x16xf32>
    %cst_22 = arith.constant dense<0xFF800000> : vector<1xf32>
    %23 = vector.multi_reduction <maximumf>, %22, %cst_22 [1] : vector<1x16xf32> to vector<1xf32>
    %24 = vector.shape_cast %23 : vector<1xf32> to vector<1x1xf32>
    %25 = vector.broadcast %24 : vector<1x1xf32> to vector<1x16xf32>
    %26 = arith.subf %22, %25 : vector<1x16xf32>
    %27 = math.exp %26 : vector<1x16xf32>
    %cst_23 = arith.constant dense<0.000000e+00> : vector<1xf32>
    %28 = vector.multi_reduction <add>, %27, %cst_23 [1] : vector<1x16xf32> to vector<1xf32>
    %29 = vector.shape_cast %28 : vector<1xf32> to vector<1x1xf32>
    %30 = vector.broadcast %29 : vector<1x1xf32> to vector<1x16xf32>
    %31 = arith.divf %27, %30 : vector<1x16xf32>
    %cst_24 = arith.constant dense<0.000000e+00> : vector<1x128xf32>
    %32 = tpu.matmul %31, %10, %cst_24 {dimension_numbers = #tpu.dot_dimension_numbers<[1], [0], [0], [1], [0, 0, 1, 1], [], []>} : vector<1x16xf32>, vector<16x128xf32>, vector<1x128xf32> -> vector<1x128xf32>
    %33 = vector.extract_strided_slice %19 {offsets = [0, 16], sizes = [1, 32], strides = [1, 1]} : vector<1x128xf32> to vector<1x32xf32>
    %34 = vector.extract_strided_slice %32 {offsets = [0, 0], sizes = [1, 32], strides = [1, 1]} : vector<1x128xf32> to vector<1x32xf32>
    %35 = arith.addf %33, %34 : vector<1x32xf32>
    %cst_25 = arith.constant 0.000000e+00 : f32
    %36 = vector.broadcast %cst_25 : f32 to vector<1x32xf32>
    %37 = arith.maximumf %35, %36 : vector<1x32xf32>
    %cst_26 = arith.constant dense<0.000000e+00> : vector<1x128xf32>
    %38 = tpu.matmul %37, %13, %cst_26 {dimension_numbers = #tpu.dot_dimension_numbers<[1], [0], [0], [1], [0, 0, 1, 1], [], []>} : vector<1x32xf32>, vector<32x128xf32>, vector<1x128xf32> -> vector<1x128xf32>
    %39 = arith.addf %38, %14 : vector<1x128xf32>
    %40 = vector.extract_strided_slice %17 {offsets = [0, 16], sizes = [1, 96], strides = [1, 1]} : vector<1x256xf32> to vector<1x96xf32>
    %41 = vector.extract_strided_slice %39 {offsets = [0, 0], sizes = [1, 64], strides = [1, 1]} : vector<1x128xf32> to vector<1x64xf32>
    %42 = vector.extract_strided_slice %40 {offsets = [0, 0], sizes = [1, 64], strides = [1, 1]} : vector<1x96xf32> to vector<1x64xf32>
    %43 = arith.addf %41, %42 : vector<1x64xf32>
    %44 = arith.negf %43 : vector<1x64xf32>
    %45 = math.exp %44 : vector<1x64xf32>
    %cst_27 = arith.constant 1.000000e+00 : f32
    %46 = vector.broadcast %cst_27 : f32 to vector<1x64xf32>
    %47 = arith.addf %46, %45 : vector<1x64xf32>
    %48 = arith.divf %46, %47 : vector<1x64xf32>
    %49 = vector.extract_strided_slice %48 {offsets = [0, 0], sizes = [1, 32], strides = [1, 1]} : vector<1x64xf32> to vector<1x32xf32>
    %50 = vector.extract_strided_slice %48 {offsets = [0, 32], sizes = [1, 32], strides = [1, 1]} : vector<1x64xf32> to vector<1x32xf32>
    %51 = vector.extract_strided_slice %39 {offsets = [0, 64], sizes = [1, 32], strides = [1, 1]} : vector<1x128xf32> to vector<1x32xf32>
    %52 = vector.extract_strided_slice %40 {offsets = [0, 64], sizes = [1, 32], strides = [1, 1]} : vector<1x96xf32> to vector<1x32xf32>
    %53 = arith.mulf %49, %52 : vector<1x32xf32>
    %54 = arith.addf %51, %53 : vector<1x32xf32>
    %55 = math.tanh %54 : vector<1x32xf32>
    %cst_28 = arith.constant 1.000000e+00 : f32
    %56 = vector.broadcast %cst_28 : f32 to vector<1x32xf32>
    %57 = arith.subf %56, %50 : vector<1x32xf32>
    %58 = arith.mulf %57, %55 : vector<1x32xf32>
    %59 = arith.mulf %50, %15 : vector<1x32xf32>
    %60 = arith.addf %58, %59 : vector<1x32xf32>
    %cst_29 = arith.constant dense<0.000000e+00> : vector<1x256xf32>
    %61 = tpu.matmul %60, %11, %cst_29 {dimension_numbers = #tpu.dot_dimension_numbers<[1], [0], [0], [1], [0, 0, 1, 1], [], []>} : vector<1x32xf32>, vector<32x256xf32>, vector<1x256xf32> -> vector<1x256xf32>
    %62 = arith.addf %61, %12 : vector<1x256xf32>
    %63 = vector.extract_strided_slice %62 {offsets = [0, 112], sizes = [1, 64], strides = [1, 1]} : vector<1x256xf32> to vector<1x64xf32>
    %cst_30 = arith.constant dense<0xFF800000> : vector<1xf32>
    %64 = vector.multi_reduction <maximumf>, %63, %cst_30 [1] : vector<1x64xf32> to vector<1xf32>
    %65 = vector.shape_cast %64 : vector<1xf32> to vector<1x1xf32>
    %66 = vector.broadcast %65 : vector<1x1xf32> to vector<1x64xf32>
    %67 = arith.subf %63, %66 : vector<1x64xf32>
    %68 = math.exp %67 : vector<1x64xf32>
    %cst_31 = arith.constant dense<0.000000e+00> : vector<1xf32>
    %69 = vector.multi_reduction <add>, %68, %cst_31 [1] : vector<1x64xf32> to vector<1xf32>
    %70 = vector.shape_cast %69 : vector<1xf32> to vector<1x1xf32>
    %71 = math.log %70 : vector<1x1xf32>
    %72 = vector.broadcast %71 : vector<1x1xf32> to vector<1x64xf32>
    %73 = arith.subf %67, %72 : vector<1x64xf32>
    %cst_32 = arith.constant 0.000000e+00 : f32
    %74 = vector.broadcast %cst_32 : f32 to vector<1x16xf32>
    %75 = tpu.concatenate %73, %60, %31, %74 in 1 : vector<1x64xf32>, vector<1x32xf32>, vector<1x16xf32>, vector<1x16xf32> -> vector<1x128xf32>
    %76 = arith.index_cast %c0_i32_20 : i32 to index
    %c0_33 = arith.constant 0 : index
    %77 = vector.load %arg6[%76, %c0_33] : memref<8x128xf32, #tpu.memory_space<vmem>>, vector<1x128xf32>
    tpu.vector_store %arg6[%76, %c0_33], %75 {strides = array<i32>} : memref<8x128xf32, #tpu.memory_space<vmem>>, vector<1x128xf32>,
    %c1_i32_34 = arith.constant 1 : i32
    %78 = arith.index_cast %c1_i32_34 : i32 to index
    %c0_35 = arith.constant 0 : index
    %79 = vector.load %arg8[%78, %c0_35] : memref<8x128xf32, #tpu.memory_space<vmem>>, vector<1x128xf32>
    %80 = vector.extract_strided_slice %79 {offsets = [0, 0], sizes = [1, 16], strides = [1, 1]} : vector<1x128xf32> to vector<1x16xf32>
    %81 = vector.extract_strided_slice %62 {offsets = [0, 0], sizes = [1, 16], strides = [1, 1]} : vector<1x256xf32> to vector<1x16xf32>
    %82 = arith.addf %80, %81 : vector<1x16xf32>
    %cst_36 = arith.constant dense<0xFF800000> : vector<1xf32>
    %83 = vector.multi_reduction <maximumf>, %82, %cst_36 [1] : vector<1x16xf32> to vector<1xf32>
    %84 = vector.shape_cast %83 : vector<1xf32> to vector<1x1xf32>
    %85 = vector.broadcast %84 : vector<1x1xf32> to vector<1x16xf32>
    %86 = arith.subf %82, %85 : vector<1x16xf32>
    %87 = math.exp %86 : vector<1x16xf32>
    %cst_37 = arith.constant dense<0.000000e+00> : vector<1xf32>
    %88 = vector.multi_reduction <add>, %87, %cst_37 [1] : vector<1x16xf32> to vector<1xf32>
    %89 = vector.shape_cast %88 : vector<1xf32> to vector<1x1xf32>
    %90 = vector.broadcast %89 : vector<1x1xf32> to vector<1x16xf32>
    %91 = arith.divf %87, %90 : vector<1x16xf32>
    %cst_38 = arith.constant dense<0.000000e+00> : vector<1x128xf32>
    %92 = tpu.matmul %91, %10, %cst_38 {dimension_numbers = #tpu.dot_dimension_numbers<[1], [0], [0], [1], [0, 0, 1, 1], [], []>} : vector<1x16xf32>, vector<16x128xf32>, vector<1x128xf32> -> vector<1x128xf32>
    %93 = vector.extract_strided_slice %79 {offsets = [0, 16], sizes = [1, 32], strides = [1, 1]} : vector<1x128xf32> to vector<1x32xf32>
    %94 = vector.extract_strided_slice %92 {offsets = [0, 0], sizes = [1, 32], strides = [1, 1]} : vector<1x128xf32> to vector<1x32xf32>
    %95 = arith.addf %93, %94 : vector<1x32xf32>
    %cst_39 = arith.constant 0.000000e+00 : f32
    %96 = vector.broadcast %cst_39 : f32 to vector<1x32xf32>
    %97 = arith.maximumf %95, %96 : vector<1x32xf32>
    %cst_40 = arith.constant dense<0.000000e+00> : vector<1x128xf32>
    %98 = tpu.matmul %97, %13, %cst_40 {dimension_numbers = #tpu.dot_dimension_numbers<[1], [0], [0], [1], [0, 0, 1, 1], [], []>} : vector<1x32xf32>, vector<32x128xf32>, vector<1x128xf32> -> vector<1x128xf32>
    %99 = arith.addf %98, %14 : vector<1x128xf32>
    %100 = vector.extract_strided_slice %62 {offsets = [0, 16], sizes = [1, 96], strides = [1, 1]} : vector<1x256xf32> to vector<1x96xf32>
    %101 = vector.extract_strided_slice %99 {offsets = [0, 0], sizes = [1, 64], strides = [1, 1]} : vector<1x128xf32> to vector<1x64xf32>
    %102 = vector.extract_strided_slice %100 {offsets = [0, 0], sizes = [1, 64], strides = [1, 1]} : vector<1x96xf32> to vector<1x64xf32>
    %103 = arith.addf %101, %102 : vector<1x64xf32>
    %104 = arith.negf %103 : vector<1x64xf32>
    %105 = math.exp %104 : vector<1x64xf32>
    %cst_41 = arith.constant 1.000000e+00 : f32
    %106 = vector.broadcast %cst_41 : f32 to vector<1x64xf32>
    %107 = arith.addf %106, %105 : vector<1x64xf32>
    %108 = arith.divf %106, %107 : vector<1x64xf32>
    %109 = vector.extract_strided_slice %108 {offsets = [0, 0], sizes = [1, 32], strides = [1, 1]} : vector<1x64xf32> to vector<1x32xf32>
    %110 = vector.extract_strided_slice %108 {offsets = [0, 32], sizes = [1, 32], strides = [1, 1]} : vector<1x64xf32> to vector<1x32xf32>
    %111 = vector.extract_strided_slice %99 {offsets = [0, 64], sizes = [1, 32], strides = [1, 1]} : vector<1x128xf32> to vector<1x32xf32>
    %112 = vector.extract_strided_slice %100 {offsets = [0, 64], sizes = [1, 32], strides = [1, 1]} : vector<1x96xf32> to vector<1x32xf32>
    %113 = arith.mulf %109, %112 : vector<1x32xf32>
    %114 = arith.addf %111, %113 : vector<1x32xf32>
    %115 = math.tanh %114 : vector<1x32xf32>
    %cst_42 = arith.constant 1.000000e+00 : f32
    %116 = vector.broadcast %cst_42 : f32 to vector<1x32xf32>
    %117 = arith.subf %116, %110 : vector<1x32xf32>
    %118 = arith.mulf %117, %115 : vector<1x32xf32>
    %119 = arith.mulf %110, %60 : vector<1x32xf32>
    %120 = arith.addf %118, %119 : vector<1x32xf32>
    %cst_43 = arith.constant dense<0.000000e+00> : vector<1x256xf32>
    %121 = tpu.matmul %120, %11, %cst_43 {dimension_numbers = #tpu.dot_dimension_numbers<[1], [0], [0], [1], [0, 0, 1, 1], [], []>} : vector<1x32xf32>, vector<32x256xf32>, vector<1x256xf32> -> vector<1x256xf32>
    %122 = arith.addf %121, %12 : vector<1x256xf32>
    %123 = vector.extract_strided_slice %122 {offsets = [0, 112], sizes = [1, 64], strides = [1, 1]} : vector<1x256xf32> to vector<1x64xf32>
    %cst_44 = arith.constant dense<0xFF800000> : vector<1xf32>
    %124 = vector.multi_reduction <maximumf>, %123, %cst_44 [1] : vector<1x64xf32> to vector<1xf32>
    %125 = vector.shape_cast %124 : vector<1xf32> to vector<1x1xf32>
    %126 = vector.broadcast %125 : vector<1x1xf32> to vector<1x64xf32>
    %127 = arith.subf %123, %126 : vector<1x64xf32>
    %128 = math.exp %127 : vector<1x64xf32>
    %cst_45 = arith.constant dense<0.000000e+00> : vector<1xf32>
    %129 = vector.multi_reduction <add>, %128, %cst_45 [1] : vector<1x64xf32> to vector<1xf32>
    %130 = vector.shape_cast %129 : vector<1xf32> to vector<1x1xf32>
    %131 = math.log %130 : vector<1x1xf32>
    %132 = vector.broadcast %131 : vector<1x1xf32> to vector<1x64xf32>
    %133 = arith.subf %127, %132 : vector<1x64xf32>
    %cst_46 = arith.constant 0.000000e+00 : f32
    %134 = vector.broadcast %cst_46 : f32 to vector<1x16xf32>
    %135 = tpu.concatenate %133, %120, %91, %134 in 1 : vector<1x64xf32>, vector<1x32xf32>, vector<1x16xf32>, vector<1x16xf32> -> vector<1x128xf32>
    %136 = arith.index_cast %c1_i32_34 : i32 to index
    %c0_47 = arith.constant 0 : index
    %137 = vector.load %arg6[%136, %c0_47] : memref<8x128xf32, #tpu.memory_space<vmem>>, vector<1x128xf32>
    tpu.vector_store %arg6[%136, %c0_47], %135 {strides = array<i32>} : memref<8x128xf32, #tpu.memory_space<vmem>>, vector<1x128xf32>,
    %c2_i32 = arith.constant 2 : i32
    %138 = arith.index_cast %c2_i32 : i32 to index
    %c0_48 = arith.constant 0 : index
    %139 = vector.load %arg8[%138, %c0_48] : memref<8x128xf32, #tpu.memory_space<vmem>>, vector<1x128xf32>
    %140 = vector.extract_strided_slice %139 {offsets = [0, 0], sizes = [1, 16], strides = [1, 1]} : vector<1x128xf32> to vector<1x16xf32>
    %141 = vector.extract_strided_slice %122 {offsets = [0, 0], sizes = [1, 16], strides = [1, 1]} : vector<1x256xf32> to vector<1x16xf32>
    %142 = arith.addf %140, %141 : vector<1x16xf32>
    %cst_49 = arith.constant dense<0xFF800000> : vector<1xf32>
    %143 = vector.multi_reduction <maximumf>, %142, %cst_49 [1] : vector<1x16xf32> to vector<1xf32>
    %144 = vector.shape_cast %143 : vector<1xf32> to vector<1x1xf32>
    %145 = vector.broadcast %144 : vector<1x1xf32> to vector<1x16xf32>
    %146 = arith.subf %142, %145 : vector<1x16xf32>
    %147 = math.exp %146 : vector<1x16xf32>
    %cst_50 = arith.constant dense<0.000000e+00> : vector<1xf32>
    %148 = vector.multi_reduction <add>, %147, %cst_50 [1] : vector<1x16xf32> to vector<1xf32>
    %149 = vector.shape_cast %148 : vector<1xf32> to vector<1x1xf32>
    %150 = vector.broadcast %149 : vector<1x1xf32> to vector<1x16xf32>
    %151 = arith.divf %147, %150 : vector<1x16xf32>
    %cst_51 = arith.constant dense<0.000000e+00> : vector<1x128xf32>
    %152 = tpu.matmul %151, %10, %cst_51 {dimension_numbers = #tpu.dot_dimension_numbers<[1], [0], [0], [1], [0, 0, 1, 1], [], []>} : vector<1x16xf32>, vector<16x128xf32>, vector<1x128xf32> -> vector<1x128xf32>
    %153 = vector.extract_strided_slice %139 {offsets = [0, 16], sizes = [1, 32], strides = [1, 1]} : vector<1x128xf32> to vector<1x32xf32>
    %154 = vector.extract_strided_slice %152 {offsets = [0, 0], sizes = [1, 32], strides = [1, 1]} : vector<1x128xf32> to vector<1x32xf32>
    %155 = arith.addf %153, %154 : vector<1x32xf32>
    %cst_52 = arith.constant 0.000000e+00 : f32
    %156 = vector.broadcast %cst_52 : f32 to vector<1x32xf32>
    %157 = arith.maximumf %155, %156 : vector<1x32xf32>
    %cst_53 = arith.constant dense<0.000000e+00> : vector<1x128xf32>
    %158 = tpu.matmul %157, %13, %cst_53 {dimension_numbers = #tpu.dot_dimension_numbers<[1], [0], [0], [1], [0, 0, 1, 1], [], []>} : vector<1x32xf32>, vector<32x128xf32>, vector<1x128xf32> -> vector<1x128xf32>
    %159 = arith.addf %158, %14 : vector<1x128xf32>
    %160 = vector.extract_strided_slice %122 {offsets = [0, 16], sizes = [1, 96], strides = [1, 1]} : vector<1x256xf32> to vector<1x96xf32>
    %161 = vector.extract_strided_slice %159 {offsets = [0, 0], sizes = [1, 64], strides = [1, 1]} : vector<1x128xf32> to vector<1x64xf32>
    %162 = vector.extract_strided_slice %160 {offsets = [0, 0], sizes = [1, 64], strides = [1, 1]} : vector<1x96xf32> to vector<1x64xf32>
    %163 = arith.addf %161, %162 : vector<1x64xf32>
    %164 = arith.negf %163 : vector<1x64xf32>
    %165 = math.exp %164 : vector<1x64xf32>
    %cst_54 = arith.constant 1.000000e+00 : f32
    %166 = vector.broadcast %cst_54 : f32 to vector<1x64xf32>
    %167 = arith.addf %166, %165 : vector<1x64xf32>
    %168 = arith.divf %166, %167 : vector<1x64xf32>
    %169 = vector.extract_strided_slice %168 {offsets = [0, 0], sizes = [1, 32], strides = [1, 1]} : vector<1x64xf32> to vector<1x32xf32>
    %170 = vector.extract_strided_slice %168 {offsets = [0, 32], sizes = [1, 32], strides = [1, 1]} : vector<1x64xf32> to vector<1x32xf32>
    %171 = vector.extract_strided_slice %159 {offsets = [0, 64], sizes = [1, 32], strides = [1, 1]} : vector<1x128xf32> to vector<1x32xf32>
    %172 = vector.extract_strided_slice %160 {offsets = [0, 64], sizes = [1, 32], strides = [1, 1]} : vector<1x96xf32> to vector<1x32xf32>
    %173 = arith.mulf %169, %172 : vector<1x32xf32>
    %174 = arith.addf %171, %173 : vector<1x32xf32>
    %175 = math.tanh %174 : vector<1x32xf32>
    %cst_55 = arith.constant 1.000000e+00 : f32
    %176 = vector.broadcast %cst_55 : f32 to vector<1x32xf32>
    %177 = arith.subf %176, %170 : vector<1x32xf32>
    %178 = arith.mulf %177, %175 : vector<1x32xf32>
    %179 = arith.mulf %170, %120 : vector<1x32xf32>
    %180 = arith.addf %178, %179 : vector<1x32xf32>
    %cst_56 = arith.constant dense<0.000000e+00> : vector<1x256xf32>
    %181 = tpu.matmul %180, %11, %cst_56 {dimension_numbers = #tpu.dot_dimension_numbers<[1], [0], [0], [1], [0, 0, 1, 1], [], []>} : vector<1x32xf32>, vector<32x256xf32>, vector<1x256xf32> -> vector<1x256xf32>
    %182 = arith.addf %181, %12 : vector<1x256xf32>
    %183 = vector.extract_strided_slice %182 {offsets = [0, 112], sizes = [1, 64], strides = [1, 1]} : vector<1x256xf32> to vector<1x64xf32>
    %cst_57 = arith.constant dense<0xFF800000> : vector<1xf32>
    %184 = vector.multi_reduction <maximumf>, %183, %cst_57 [1] : vector<1x64xf32> to vector<1xf32>
    %185 = vector.shape_cast %184 : vector<1xf32> to vector<1x1xf32>
    %186 = vector.broadcast %185 : vector<1x1xf32> to vector<1x64xf32>
    %187 = arith.subf %183, %186 : vector<1x64xf32>
    %188 = math.exp %187 : vector<1x64xf32>
    %cst_58 = arith.constant dense<0.000000e+00> : vector<1xf32>
    %189 = vector.multi_reduction <add>, %188, %cst_58 [1] : vector<1x64xf32> to vector<1xf32>
    %190 = vector.shape_cast %189 : vector<1xf32> to vector<1x1xf32>
    %191 = math.log %190 : vector<1x1xf32>
    %192 = vector.broadcast %191 : vector<1x1xf32> to vector<1x64xf32>
    %193 = arith.subf %187, %192 : vector<1x64xf32>
    %cst_59 = arith.constant 0.000000e+00 : f32
    %194 = vector.broadcast %cst_59 : f32 to vector<1x16xf32>
    %195 = tpu.concatenate %193, %180, %151, %194 in 1 : vector<1x64xf32>, vector<1x32xf32>, vector<1x16xf32>, vector<1x16xf32> -> vector<1x128xf32>
    %196 = arith.index_cast %c2_i32 : i32 to index
    %c0_60 = arith.constant 0 : index
    %197 = vector.load %arg6[%196, %c0_60] : memref<8x128xf32, #tpu.memory_space<vmem>>, vector<1x128xf32>
    tpu.vector_store %arg6[%196, %c0_60], %195 {strides = array<i32>} : memref<8x128xf32, #tpu.memory_space<vmem>>, vector<1x128xf32>,
    %c3_i32 = arith.constant 3 : i32
    %198 = arith.index_cast %c3_i32 : i32 to index
    %c0_61 = arith.constant 0 : index
    %199 = vector.load %arg8[%198, %c0_61] : memref<8x128xf32, #tpu.memory_space<vmem>>, vector<1x128xf32>
    %200 = vector.extract_strided_slice %199 {offsets = [0, 0], sizes = [1, 16], strides = [1, 1]} : vector<1x128xf32> to vector<1x16xf32>
    %201 = vector.extract_strided_slice %182 {offsets = [0, 0], sizes = [1, 16], strides = [1, 1]} : vector<1x256xf32> to vector<1x16xf32>
    %202 = arith.addf %200, %201 : vector<1x16xf32>
    %cst_62 = arith.constant dense<0xFF800000> : vector<1xf32>
    %203 = vector.multi_reduction <maximumf>, %202, %cst_62 [1] : vector<1x16xf32> to vector<1xf32>
    %204 = vector.shape_cast %203 : vector<1xf32> to vector<1x1xf32>
    %205 = vector.broadcast %204 : vector<1x1xf32> to vector<1x16xf32>
    %206 = arith.subf %202, %205 : vector<1x16xf32>
    %207 = math.exp %206 : vector<1x16xf32>
    %cst_63 = arith.constant dense<0.000000e+00> : vector<1xf32>
    %208 = vector.multi_reduction <add>, %207, %cst_63 [1] : vector<1x16xf32> to vector<1xf32>
    %209 = vector.shape_cast %208 : vector<1xf32> to vector<1x1xf32>
    %210 = vector.broadcast %209 : vector<1x1xf32> to vector<1x16xf32>
    %211 = arith.divf %207, %210 : vector<1x16xf32>
    %cst_64 = arith.constant dense<0.000000e+00> : vector<1x128xf32>
    %212 = tpu.matmul %211, %10, %cst_64 {dimension_numbers = #tpu.dot_dimension_numbers<[1], [0], [0], [1], [0, 0, 1, 1], [], []>} : vector<1x16xf32>, vector<16x128xf32>, vector<1x128xf32> -> vector<1x128xf32>
    %213 = vector.extract_strided_slice %199 {offsets = [0, 16], sizes = [1, 32], strides = [1, 1]} : vector<1x128xf32> to vector<1x32xf32>
    %214 = vector.extract_strided_slice %212 {offsets = [0, 0], sizes = [1, 32], strides = [1, 1]} : vector<1x128xf32> to vector<1x32xf32>
    %215 = arith.addf %213, %214 : vector<1x32xf32>
    %cst_65 = arith.constant 0.000000e+00 : f32
    %216 = vector.broadcast %cst_65 : f32 to vector<1x32xf32>
    %217 = arith.maximumf %215, %216 : vector<1x32xf32>
    %cst_66 = arith.constant dense<0.000000e+00> : vector<1x128xf32>
    %218 = tpu.matmul %217, %13, %cst_66 {dimension_numbers = #tpu.dot_dimension_numbers<[1], [0], [0], [1], [0, 0, 1, 1], [], []>} : vector<1x32xf32>, vector<32x128xf32>, vector<1x128xf32> -> vector<1x128xf32>
    %219 = arith.addf %218, %14 : vector<1x128xf32>
    %220 = vector.extract_strided_slice %182 {offsets = [0, 16], sizes = [1, 96], strides = [1, 1]} : vector<1x256xf32> to vector<1x96xf32>
    %221 = vector.extract_strided_slice %219 {offsets = [0, 0], sizes = [1, 64], strides = [1, 1]} : vector<1x128xf32> to vector<1x64xf32>
    %222 = vector.extract_strided_slice %220 {offsets = [0, 0], sizes = [1, 64], strides = [1, 1]} : vector<1x96xf32> to vector<1x64xf32>
    %223 = arith.addf %221, %222 : vector<1x64xf32>
    %224 = arith.negf %223 : vector<1x64xf32>
    %225 = math.exp %224 : vector<1x64xf32>
    %cst_67 = arith.constant 1.000000e+00 : f32
    %226 = vector.broadcast %cst_67 : f32 to vector<1x64xf32>
    %227 = arith.addf %226, %225 : vector<1x64xf32>
    %228 = arith.divf %226, %227 : vector<1x64xf32>
    %229 = vector.extract_strided_slice %228 {offsets = [0, 0], sizes = [1, 32], strides = [1, 1]} : vector<1x64xf32> to vector<1x32xf32>
    %230 = vector.extract_strided_slice %228 {offsets = [0, 32], sizes = [1, 32], strides = [1, 1]} : vector<1x64xf32> to vector<1x32xf32>
    %231 = vector.extract_strided_slice %219 {offsets = [0, 64], sizes = [1, 32], strides = [1, 1]} : vector<1x128xf32> to vector<1x32xf32>
    %232 = vector.extract_strided_slice %220 {offsets = [0, 64], sizes = [1, 32], strides = [1, 1]} : vector<1x96xf32> to vector<1x32xf32>
    %233 = arith.mulf %229, %232 : vector<1x32xf32>
    %234 = arith.addf %231, %233 : vector<1x32xf32>
    %235 = math.tanh %234 : vector<1x32xf32>
    %cst_68 = arith.constant 1.000000e+00 : f32
    %236 = vector.broadcast %cst_68 : f32 to vector<1x32xf32>
    %237 = arith.subf %236, %230 : vector<1x32xf32>
    %238 = arith.mulf %237, %235 : vector<1x32xf32>
    %239 = arith.mulf %230, %180 : vector<1x32xf32>
    %240 = arith.addf %238, %239 : vector<1x32xf32>
    %cst_69 = arith.constant dense<0.000000e+00> : vector<1x256xf32>
    %241 = tpu.matmul %240, %11, %cst_69 {dimension_numbers = #tpu.dot_dimension_numbers<[1], [0], [0], [1], [0, 0, 1, 1], [], []>} : vector<1x32xf32>, vector<32x256xf32>, vector<1x256xf32> -> vector<1x256xf32>
    %242 = arith.addf %241, %12 : vector<1x256xf32>
    %243 = vector.extract_strided_slice %242 {offsets = [0, 112], sizes = [1, 64], strides = [1, 1]} : vector<1x256xf32> to vector<1x64xf32>
    %cst_70 = arith.constant dense<0xFF800000> : vector<1xf32>
    %244 = vector.multi_reduction <maximumf>, %243, %cst_70 [1] : vector<1x64xf32> to vector<1xf32>
    %245 = vector.shape_cast %244 : vector<1xf32> to vector<1x1xf32>
    %246 = vector.broadcast %245 : vector<1x1xf32> to vector<1x64xf32>
    %247 = arith.subf %243, %246 : vector<1x64xf32>
    %248 = math.exp %247 : vector<1x64xf32>
    %cst_71 = arith.constant dense<0.000000e+00> : vector<1xf32>
    %249 = vector.multi_reduction <add>, %248, %cst_71 [1] : vector<1x64xf32> to vector<1xf32>
    %250 = vector.shape_cast %249 : vector<1xf32> to vector<1x1xf32>
    %251 = math.log %250 : vector<1x1xf32>
    %252 = vector.broadcast %251 : vector<1x1xf32> to vector<1x64xf32>
    %253 = arith.subf %247, %252 : vector<1x64xf32>
    %cst_72 = arith.constant 0.000000e+00 : f32
    %254 = vector.broadcast %cst_72 : f32 to vector<1x16xf32>
    %255 = tpu.concatenate %253, %240, %211, %254 in 1 : vector<1x64xf32>, vector<1x32xf32>, vector<1x16xf32>, vector<1x16xf32> -> vector<1x128xf32>
    %256 = arith.index_cast %c3_i32 : i32 to index
    %c0_73 = arith.constant 0 : index
    %257 = vector.load %arg6[%256, %c0_73] : memref<8x128xf32, #tpu.memory_space<vmem>>, vector<1x128xf32>
    tpu.vector_store %arg6[%256, %c0_73], %255 {strides = array<i32>} : memref<8x128xf32, #tpu.memory_space<vmem>>, vector<1x128xf32>,
    %c4_i32 = arith.constant 4 : i32
    %258 = arith.index_cast %c4_i32 : i32 to index
    %c0_74 = arith.constant 0 : index
    %259 = vector.load %arg8[%258, %c0_74] : memref<8x128xf32, #tpu.memory_space<vmem>>, vector<1x128xf32>
    %260 = vector.extract_strided_slice %259 {offsets = [0, 0], sizes = [1, 16], strides = [1, 1]} : vector<1x128xf32> to vector<1x16xf32>
    %261 = vector.extract_strided_slice %242 {offsets = [0, 0], sizes = [1, 16], strides = [1, 1]} : vector<1x256xf32> to vector<1x16xf32>
    %262 = arith.addf %260, %261 : vector<1x16xf32>
    %cst_75 = arith.constant dense<0xFF800000> : vector<1xf32>
    %263 = vector.multi_reduction <maximumf>, %262, %cst_75 [1] : vector<1x16xf32> to vector<1xf32>
    %264 = vector.shape_cast %263 : vector<1xf32> to vector<1x1xf32>
    %265 = vector.broadcast %264 : vector<1x1xf32> to vector<1x16xf32>
    %266 = arith.subf %262, %265 : vector<1x16xf32>
    %267 = math.exp %266 : vector<1x16xf32>
    %cst_76 = arith.constant dense<0.000000e+00> : vector<1xf32>
    %268 = vector.multi_reduction <add>, %267, %cst_76 [1] : vector<1x16xf32> to vector<1xf32>
    %269 = vector.shape_cast %268 : vector<1xf32> to vector<1x1xf32>
    %270 = vector.broadcast %269 : vector<1x1xf32> to vector<1x16xf32>
    %271 = arith.divf %267, %270 : vector<1x16xf32>
    %cst_77 = arith.constant dense<0.000000e+00> : vector<1x128xf32>
    %272 = tpu.matmul %271, %10, %cst_77 {dimension_numbers = #tpu.dot_dimension_numbers<[1], [0], [0], [1], [0, 0, 1, 1], [], []>} : vector<1x16xf32>, vector<16x128xf32>, vector<1x128xf32> -> vector<1x128xf32>
    %273 = vector.extract_strided_slice %259 {offsets = [0, 16], sizes = [1, 32], strides = [1, 1]} : vector<1x128xf32> to vector<1x32xf32>
    %274 = vector.extract_strided_slice %272 {offsets = [0, 0], sizes = [1, 32], strides = [1, 1]} : vector<1x128xf32> to vector<1x32xf32>
    %275 = arith.addf %273, %274 : vector<1x32xf32>
    %cst_78 = arith.constant 0.000000e+00 : f32
    %276 = vector.broadcast %cst_78 : f32 to vector<1x32xf32>
    %277 = arith.maximumf %275, %276 : vector<1x32xf32>
    %cst_79 = arith.constant dense<0.000000e+00> : vector<1x128xf32>
    %278 = tpu.matmul %277, %13, %cst_79 {dimension_numbers = #tpu.dot_dimension_numbers<[1], [0], [0], [1], [0, 0, 1, 1], [], []>} : vector<1x32xf32>, vector<32x128xf32>, vector<1x128xf32> -> vector<1x128xf32>
    %279 = arith.addf %278, %14 : vector<1x128xf32>
    %280 = vector.extract_strided_slice %242 {offsets = [0, 16], sizes = [1, 96], strides = [1, 1]} : vector<1x256xf32> to vector<1x96xf32>
    %281 = vector.extract_strided_slice %279 {offsets = [0, 0], sizes = [1, 64], strides = [1, 1]} : vector<1x128xf32> to vector<1x64xf32>
    %282 = vector.extract_strided_slice %280 {offsets = [0, 0], sizes = [1, 64], strides = [1, 1]} : vector<1x96xf32> to vector<1x64xf32>
    %283 = arith.addf %281, %282 : vector<1x64xf32>
    %284 = arith.negf %283 : vector<1x64xf32>
    %285 = math.exp %284 : vector<1x64xf32>
    %cst_80 = arith.constant 1.000000e+00 : f32
    %286 = vector.broadcast %cst_80 : f32 to vector<1x64xf32>
    %287 = arith.addf %286, %285 : vector<1x64xf32>
    %288 = arith.divf %286, %287 : vector<1x64xf32>
    %289 = vector.extract_strided_slice %288 {offsets = [0, 0], sizes = [1, 32], strides = [1, 1]} : vector<1x64xf32> to vector<1x32xf32>
    %290 = vector.extract_strided_slice %288 {offsets = [0, 32], sizes = [1, 32], strides = [1, 1]} : vector<1x64xf32> to vector<1x32xf32>
    %291 = vector.extract_strided_slice %279 {offsets = [0, 64], sizes = [1, 32], strides = [1, 1]} : vector<1x128xf32> to vector<1x32xf32>
    %292 = vector.extract_strided_slice %280 {offsets = [0, 64], sizes = [1, 32], strides = [1, 1]} : vector<1x96xf32> to vector<1x32xf32>
    %293 = arith.mulf %289, %292 : vector<1x32xf32>
    %294 = arith.addf %291, %293 : vector<1x32xf32>
    %295 = math.tanh %294 : vector<1x32xf32>
    %cst_81 = arith.constant 1.000000e+00 : f32
    %296 = vector.broadcast %cst_81 : f32 to vector<1x32xf32>
    %297 = arith.subf %296, %290 : vector<1x32xf32>
    %298 = arith.mulf %297, %295 : vector<1x32xf32>
    %299 = arith.mulf %290, %240 : vector<1x32xf32>
    %300 = arith.addf %298, %299 : vector<1x32xf32>
    %cst_82 = arith.constant dense<0.000000e+00> : vector<1x256xf32>
    %301 = tpu.matmul %300, %11, %cst_82 {dimension_numbers = #tpu.dot_dimension_numbers<[1], [0], [0], [1], [0, 0, 1, 1], [], []>} : vector<1x32xf32>, vector<32x256xf32>, vector<1x256xf32> -> vector<1x256xf32>
    %302 = arith.addf %301, %12 : vector<1x256xf32>
    %303 = vector.extract_strided_slice %302 {offsets = [0, 112], sizes = [1, 64], strides = [1, 1]} : vector<1x256xf32> to vector<1x64xf32>
    %cst_83 = arith.constant dense<0xFF800000> : vector<1xf32>
    %304 = vector.multi_reduction <maximumf>, %303, %cst_83 [1] : vector<1x64xf32> to vector<1xf32>
    %305 = vector.shape_cast %304 : vector<1xf32> to vector<1x1xf32>
    %306 = vector.broadcast %305 : vector<1x1xf32> to vector<1x64xf32>
    %307 = arith.subf %303, %306 : vector<1x64xf32>
    %308 = math.exp %307 : vector<1x64xf32>
    %cst_84 = arith.constant dense<0.000000e+00> : vector<1xf32>
    %309 = vector.multi_reduction <add>, %308, %cst_84 [1] : vector<1x64xf32> to vector<1xf32>
    %310 = vector.shape_cast %309 : vector<1xf32> to vector<1x1xf32>
    %311 = math.log %310 : vector<1x1xf32>
    %312 = vector.broadcast %311 : vector<1x1xf32> to vector<1x64xf32>
    %313 = arith.subf %307, %312 : vector<1x64xf32>
    %cst_85 = arith.constant 0.000000e+00 : f32
    %314 = vector.broadcast %cst_85 : f32 to vector<1x16xf32>
    %315 = tpu.concatenate %313, %300, %271, %314 in 1 : vector<1x64xf32>, vector<1x32xf32>, vector<1x16xf32>, vector<1x16xf32> -> vector<1x128xf32>
    %316 = arith.index_cast %c4_i32 : i32 to index
    %c0_86 = arith.constant 0 : index
    %317 = vector.load %arg6[%316, %c0_86] : memref<8x128xf32, #tpu.memory_space<vmem>>, vector<1x128xf32>
    tpu.vector_store %arg6[%316, %c0_86], %315 {strides = array<i32>} : memref<8x128xf32, #tpu.memory_space<vmem>>, vector<1x128xf32>,
    %c5_i32 = arith.constant 5 : i32
    %318 = arith.index_cast %c5_i32 : i32 to index
    %c0_87 = arith.constant 0 : index
    %319 = vector.load %arg8[%318, %c0_87] : memref<8x128xf32, #tpu.memory_space<vmem>>, vector<1x128xf32>
    %320 = vector.extract_strided_slice %319 {offsets = [0, 0], sizes = [1, 16], strides = [1, 1]} : vector<1x128xf32> to vector<1x16xf32>
    %321 = vector.extract_strided_slice %302 {offsets = [0, 0], sizes = [1, 16], strides = [1, 1]} : vector<1x256xf32> to vector<1x16xf32>
    %322 = arith.addf %320, %321 : vector<1x16xf32>
    %cst_88 = arith.constant dense<0xFF800000> : vector<1xf32>
    %323 = vector.multi_reduction <maximumf>, %322, %cst_88 [1] : vector<1x16xf32> to vector<1xf32>
    %324 = vector.shape_cast %323 : vector<1xf32> to vector<1x1xf32>
    %325 = vector.broadcast %324 : vector<1x1xf32> to vector<1x16xf32>
    %326 = arith.subf %322, %325 : vector<1x16xf32>
    %327 = math.exp %326 : vector<1x16xf32>
    %cst_89 = arith.constant dense<0.000000e+00> : vector<1xf32>
    %328 = vector.multi_reduction <add>, %327, %cst_89 [1] : vector<1x16xf32> to vector<1xf32>
    %329 = vector.shape_cast %328 : vector<1xf32> to vector<1x1xf32>
    %330 = vector.broadcast %329 : vector<1x1xf32> to vector<1x16xf32>
    %331 = arith.divf %327, %330 : vector<1x16xf32>
    %cst_90 = arith.constant dense<0.000000e+00> : vector<1x128xf32>
    %332 = tpu.matmul %331, %10, %cst_90 {dimension_numbers = #tpu.dot_dimension_numbers<[1], [0], [0], [1], [0, 0, 1, 1], [], []>} : vector<1x16xf32>, vector<16x128xf32>, vector<1x128xf32> -> vector<1x128xf32>
    %333 = vector.extract_strided_slice %319 {offsets = [0, 16], sizes = [1, 32], strides = [1, 1]} : vector<1x128xf32> to vector<1x32xf32>
    %334 = vector.extract_strided_slice %332 {offsets = [0, 0], sizes = [1, 32], strides = [1, 1]} : vector<1x128xf32> to vector<1x32xf32>
    %335 = arith.addf %333, %334 : vector<1x32xf32>
    %cst_91 = arith.constant 0.000000e+00 : f32
    %336 = vector.broadcast %cst_91 : f32 to vector<1x32xf32>
    %337 = arith.maximumf %335, %336 : vector<1x32xf32>
    %cst_92 = arith.constant dense<0.000000e+00> : vector<1x128xf32>
    %338 = tpu.matmul %337, %13, %cst_92 {dimension_numbers = #tpu.dot_dimension_numbers<[1], [0], [0], [1], [0, 0, 1, 1], [], []>} : vector<1x32xf32>, vector<32x128xf32>, vector<1x128xf32> -> vector<1x128xf32>
    %339 = arith.addf %338, %14 : vector<1x128xf32>
    %340 = vector.extract_strided_slice %302 {offsets = [0, 16], sizes = [1, 96], strides = [1, 1]} : vector<1x256xf32> to vector<1x96xf32>
    %341 = vector.extract_strided_slice %339 {offsets = [0, 0], sizes = [1, 64], strides = [1, 1]} : vector<1x128xf32> to vector<1x64xf32>
    %342 = vector.extract_strided_slice %340 {offsets = [0, 0], sizes = [1, 64], strides = [1, 1]} : vector<1x96xf32> to vector<1x64xf32>
    %343 = arith.addf %341, %342 : vector<1x64xf32>
    %344 = arith.negf %343 : vector<1x64xf32>
    %345 = math.exp %344 : vector<1x64xf32>
    %cst_93 = arith.constant 1.000000e+00 : f32
    %346 = vector.broadcast %cst_93 : f32 to vector<1x64xf32>
    %347 = arith.addf %346, %345 : vector<1x64xf32>
    %348 = arith.divf %346, %347 : vector<1x64xf32>
    %349 = vector.extract_strided_slice %348 {offsets = [0, 0], sizes = [1, 32], strides = [1, 1]} : vector<1x64xf32> to vector<1x32xf32>
    %350 = vector.extract_strided_slice %348 {offsets = [0, 32], sizes = [1, 32], strides = [1, 1]} : vector<1x64xf32> to vector<1x32xf32>
    %351 = vector.extract_strided_slice %339 {offsets = [0, 64], sizes = [1, 32], strides = [1, 1]} : vector<1x128xf32> to vector<1x32xf32>
    %352 = vector.extract_strided_slice %340 {offsets = [0, 64], sizes = [1, 32], strides = [1, 1]} : vector<1x96xf32> to vector<1x32xf32>
    %353 = arith.mulf %349, %352 : vector<1x32xf32>
    %354 = arith.addf %351, %353 : vector<1x32xf32>
    %355 = math.tanh %354 : vector<1x32xf32>
    %cst_94 = arith.constant 1.000000e+00 : f32
    %356 = vector.broadcast %cst_94 : f32 to vector<1x32xf32>
    %357 = arith.subf %356, %350 : vector<1x32xf32>
    %358 = arith.mulf %357, %355 : vector<1x32xf32>
    %359 = arith.mulf %350, %300 : vector<1x32xf32>
    %360 = arith.addf %358, %359 : vector<1x32xf32>
    %cst_95 = arith.constant dense<0.000000e+00> : vector<1x256xf32>
    %361 = tpu.matmul %360, %11, %cst_95 {dimension_numbers = #tpu.dot_dimension_numbers<[1], [0], [0], [1], [0, 0, 1, 1], [], []>} : vector<1x32xf32>, vector<32x256xf32>, vector<1x256xf32> -> vector<1x256xf32>
    %362 = arith.addf %361, %12 : vector<1x256xf32>
    %363 = vector.extract_strided_slice %362 {offsets = [0, 112], sizes = [1, 64], strides = [1, 1]} : vector<1x256xf32> to vector<1x64xf32>
    %cst_96 = arith.constant dense<0xFF800000> : vector<1xf32>
    %364 = vector.multi_reduction <maximumf>, %363, %cst_96 [1] : vector<1x64xf32> to vector<1xf32>
    %365 = vector.shape_cast %364 : vector<1xf32> to vector<1x1xf32>
    %366 = vector.broadcast %365 : vector<1x1xf32> to vector<1x64xf32>
    %367 = arith.subf %363, %366 : vector<1x64xf32>
    %368 = math.exp %367 : vector<1x64xf32>
    %cst_97 = arith.constant dense<0.000000e+00> : vector<1xf32>
    %369 = vector.multi_reduction <add>, %368, %cst_97 [1] : vector<1x64xf32> to vector<1xf32>
    %370 = vector.shape_cast %369 : vector<1xf32> to vector<1x1xf32>
    %371 = math.log %370 : vector<1x1xf32>
    %372 = vector.broadcast %371 : vector<1x1xf32> to vector<1x64xf32>
    %373 = arith.subf %367, %372 : vector<1x64xf32>
    %cst_98 = arith.constant 0.000000e+00 : f32
    %374 = vector.broadcast %cst_98 : f32 to vector<1x16xf32>
    %375 = tpu.concatenate %373, %360, %331, %374 in 1 : vector<1x64xf32>, vector<1x32xf32>, vector<1x16xf32>, vector<1x16xf32> -> vector<1x128xf32>
    %376 = arith.index_cast %c5_i32 : i32 to index
    %c0_99 = arith.constant 0 : index
    %377 = vector.load %arg6[%376, %c0_99] : memref<8x128xf32, #tpu.memory_space<vmem>>, vector<1x128xf32>
    tpu.vector_store %arg6[%376, %c0_99], %375 {strides = array<i32>} : memref<8x128xf32, #tpu.memory_space<vmem>>, vector<1x128xf32>,
    %c6_i32 = arith.constant 6 : i32
    %378 = arith.index_cast %c6_i32 : i32 to index
    %c0_100 = arith.constant 0 : index
    %379 = vector.load %arg8[%378, %c0_100] : memref<8x128xf32, #tpu.memory_space<vmem>>, vector<1x128xf32>
    %380 = vector.extract_strided_slice %379 {offsets = [0, 0], sizes = [1, 16], strides = [1, 1]} : vector<1x128xf32> to vector<1x16xf32>
    %381 = vector.extract_strided_slice %362 {offsets = [0, 0], sizes = [1, 16], strides = [1, 1]} : vector<1x256xf32> to vector<1x16xf32>
    %382 = arith.addf %380, %381 : vector<1x16xf32>
    %cst_101 = arith.constant dense<0xFF800000> : vector<1xf32>
    %383 = vector.multi_reduction <maximumf>, %382, %cst_101 [1] : vector<1x16xf32> to vector<1xf32>
    %384 = vector.shape_cast %383 : vector<1xf32> to vector<1x1xf32>
    %385 = vector.broadcast %384 : vector<1x1xf32> to vector<1x16xf32>
    %386 = arith.subf %382, %385 : vector<1x16xf32>
    %387 = math.exp %386 : vector<1x16xf32>
    %cst_102 = arith.constant dense<0.000000e+00> : vector<1xf32>
    %388 = vector.multi_reduction <add>, %387, %cst_102 [1] : vector<1x16xf32> to vector<1xf32>
    %389 = vector.shape_cast %388 : vector<1xf32> to vector<1x1xf32>
    %390 = vector.broadcast %389 : vector<1x1xf32> to vector<1x16xf32>
    %391 = arith.divf %387, %390 : vector<1x16xf32>
    %cst_103 = arith.constant dense<0.000000e+00> : vector<1x128xf32>
    %392 = tpu.matmul %391, %10, %cst_103 {dimension_numbers = #tpu.dot_dimension_numbers<[1], [0], [0], [1], [0, 0, 1, 1], [], []>} : vector<1x16xf32>, vector<16x128xf32>, vector<1x128xf32> -> vector<1x128xf32>
    %393 = vector.extract_strided_slice %379 {offsets = [0, 16], sizes = [1, 32], strides = [1, 1]} : vector<1x128xf32> to vector<1x32xf32>
    %394 = vector.extract_strided_slice %392 {offsets = [0, 0], sizes = [1, 32], strides = [1, 1]} : vector<1x128xf32> to vector<1x32xf32>
    %395 = arith.addf %393, %394 : vector<1x32xf32>
    %cst_104 = arith.constant 0.000000e+00 : f32
    %396 = vector.broadcast %cst_104 : f32 to vector<1x32xf32>
    %397 = arith.maximumf %395, %396 : vector<1x32xf32>
    %cst_105 = arith.constant dense<0.000000e+00> : vector<1x128xf32>
    %398 = tpu.matmul %397, %13, %cst_105 {dimension_numbers = #tpu.dot_dimension_numbers<[1], [0], [0], [1], [0, 0, 1, 1], [], []>} : vector<1x32xf32>, vector<32x128xf32>, vector<1x128xf32> -> vector<1x128xf32>
    %399 = arith.addf %398, %14 : vector<1x128xf32>
    %400 = vector.extract_strided_slice %362 {offsets = [0, 16], sizes = [1, 96], strides = [1, 1]} : vector<1x256xf32> to vector<1x96xf32>
    %401 = vector.extract_strided_slice %399 {offsets = [0, 0], sizes = [1, 64], strides = [1, 1]} : vector<1x128xf32> to vector<1x64xf32>
    %402 = vector.extract_strided_slice %400 {offsets = [0, 0], sizes = [1, 64], strides = [1, 1]} : vector<1x96xf32> to vector<1x64xf32>
    %403 = arith.addf %401, %402 : vector<1x64xf32>
    %404 = arith.negf %403 : vector<1x64xf32>
    %405 = math.exp %404 : vector<1x64xf32>
    %cst_106 = arith.constant 1.000000e+00 : f32
    %406 = vector.broadcast %cst_106 : f32 to vector<1x64xf32>
    %407 = arith.addf %406, %405 : vector<1x64xf32>
    %408 = arith.divf %406, %407 : vector<1x64xf32>
    %409 = vector.extract_strided_slice %408 {offsets = [0, 0], sizes = [1, 32], strides = [1, 1]} : vector<1x64xf32> to vector<1x32xf32>
    %410 = vector.extract_strided_slice %408 {offsets = [0, 32], sizes = [1, 32], strides = [1, 1]} : vector<1x64xf32> to vector<1x32xf32>
    %411 = vector.extract_strided_slice %399 {offsets = [0, 64], sizes = [1, 32], strides = [1, 1]} : vector<1x128xf32> to vector<1x32xf32>
    %412 = vector.extract_strided_slice %400 {offsets = [0, 64], sizes = [1, 32], strides = [1, 1]} : vector<1x96xf32> to vector<1x32xf32>
    %413 = arith.mulf %409, %412 : vector<1x32xf32>
    %414 = arith.addf %411, %413 : vector<1x32xf32>
    %415 = math.tanh %414 : vector<1x32xf32>
    %cst_107 = arith.constant 1.000000e+00 : f32
    %416 = vector.broadcast %cst_107 : f32 to vector<1x32xf32>
    %417 = arith.subf %416, %410 : vector<1x32xf32>
    %418 = arith.mulf %417, %415 : vector<1x32xf32>
    %419 = arith.mulf %410, %360 : vector<1x32xf32>
    %420 = arith.addf %418, %419 : vector<1x32xf32>
    %cst_108 = arith.constant dense<0.000000e+00> : vector<1x256xf32>
    %421 = tpu.matmul %420, %11, %cst_108 {dimension_numbers = #tpu.dot_dimension_numbers<[1], [0], [0], [1], [0, 0, 1, 1], [], []>} : vector<1x32xf32>, vector<32x256xf32>, vector<1x256xf32> -> vector<1x256xf32>
    %422 = arith.addf %421, %12 : vector<1x256xf32>
    %423 = vector.extract_strided_slice %422 {offsets = [0, 112], sizes = [1, 64], strides = [1, 1]} : vector<1x256xf32> to vector<1x64xf32>
    %cst_109 = arith.constant dense<0xFF800000> : vector<1xf32>
    %424 = vector.multi_reduction <maximumf>, %423, %cst_109 [1] : vector<1x64xf32> to vector<1xf32>
    %425 = vector.shape_cast %424 : vector<1xf32> to vector<1x1xf32>
    %426 = vector.broadcast %425 : vector<1x1xf32> to vector<1x64xf32>
    %427 = arith.subf %423, %426 : vector<1x64xf32>
    %428 = math.exp %427 : vector<1x64xf32>
    %cst_110 = arith.constant dense<0.000000e+00> : vector<1xf32>
    %429 = vector.multi_reduction <add>, %428, %cst_110 [1] : vector<1x64xf32> to vector<1xf32>
    %430 = vector.shape_cast %429 : vector<1xf32> to vector<1x1xf32>
    %431 = math.log %430 : vector<1x1xf32>
    %432 = vector.broadcast %431 : vector<1x1xf32> to vector<1x64xf32>
    %433 = arith.subf %427, %432 : vector<1x64xf32>
    %cst_111 = arith.constant 0.000000e+00 : f32
    %434 = vector.broadcast %cst_111 : f32 to vector<1x16xf32>
    %435 = tpu.concatenate %433, %420, %391, %434 in 1 : vector<1x64xf32>, vector<1x32xf32>, vector<1x16xf32>, vector<1x16xf32> -> vector<1x128xf32>
    %436 = arith.index_cast %c6_i32 : i32 to index
    %c0_112 = arith.constant 0 : index
    %437 = vector.load %arg6[%436, %c0_112] : memref<8x128xf32, #tpu.memory_space<vmem>>, vector<1x128xf32>
    tpu.vector_store %arg6[%436, %c0_112], %435 {strides = array<i32>} : memref<8x128xf32, #tpu.memory_space<vmem>>, vector<1x128xf32>,
    %c7_i32 = arith.constant 7 : i32
    %438 = arith.index_cast %c7_i32 : i32 to index
    %c0_113 = arith.constant 0 : index
    %439 = vector.load %arg8[%438, %c0_113] : memref<8x128xf32, #tpu.memory_space<vmem>>, vector<1x128xf32>
    %440 = vector.extract_strided_slice %439 {offsets = [0, 0], sizes = [1, 16], strides = [1, 1]} : vector<1x128xf32> to vector<1x16xf32>
    %441 = vector.extract_strided_slice %422 {offsets = [0, 0], sizes = [1, 16], strides = [1, 1]} : vector<1x256xf32> to vector<1x16xf32>
    %442 = arith.addf %440, %441 : vector<1x16xf32>
    %cst_114 = arith.constant dense<0xFF800000> : vector<1xf32>
    %443 = vector.multi_reduction <maximumf>, %442, %cst_114 [1] : vector<1x16xf32> to vector<1xf32>
    %444 = vector.shape_cast %443 : vector<1xf32> to vector<1x1xf32>
    %445 = vector.broadcast %444 : vector<1x1xf32> to vector<1x16xf32>
    %446 = arith.subf %442, %445 : vector<1x16xf32>
    %447 = math.exp %446 : vector<1x16xf32>
    %cst_115 = arith.constant dense<0.000000e+00> : vector<1xf32>
    %448 = vector.multi_reduction <add>, %447, %cst_115 [1] : vector<1x16xf32> to vector<1xf32>
    %449 = vector.shape_cast %448 : vector<1xf32> to vector<1x1xf32>
    %450 = vector.broadcast %449 : vector<1x1xf32> to vector<1x16xf32>
    %451 = arith.divf %447, %450 : vector<1x16xf32>
    %cst_116 = arith.constant dense<0.000000e+00> : vector<1x128xf32>
    %452 = tpu.matmul %451, %10, %cst_116 {dimension_numbers = #tpu.dot_dimension_numbers<[1], [0], [0], [1], [0, 0, 1, 1], [], []>} : vector<1x16xf32>, vector<16x128xf32>, vector<1x128xf32> -> vector<1x128xf32>
    %453 = vector.extract_strided_slice %439 {offsets = [0, 16], sizes = [1, 32], strides = [1, 1]} : vector<1x128xf32> to vector<1x32xf32>
    %454 = vector.extract_strided_slice %452 {offsets = [0, 0], sizes = [1, 32], strides = [1, 1]} : vector<1x128xf32> to vector<1x32xf32>
    %455 = arith.addf %453, %454 : vector<1x32xf32>
    %cst_117 = arith.constant 0.000000e+00 : f32
    %456 = vector.broadcast %cst_117 : f32 to vector<1x32xf32>
    %457 = arith.maximumf %455, %456 : vector<1x32xf32>
    %cst_118 = arith.constant dense<0.000000e+00> : vector<1x128xf32>
    %458 = tpu.matmul %457, %13, %cst_118 {dimension_numbers = #tpu.dot_dimension_numbers<[1], [0], [0], [1], [0, 0, 1, 1], [], []>} : vector<1x32xf32>, vector<32x128xf32>, vector<1x128xf32> -> vector<1x128xf32>
    %459 = arith.addf %458, %14 : vector<1x128xf32>
    %460 = vector.extract_strided_slice %422 {offsets = [0, 16], sizes = [1, 96], strides = [1, 1]} : vector<1x256xf32> to vector<1x96xf32>
    %461 = vector.extract_strided_slice %459 {offsets = [0, 0], sizes = [1, 64], strides = [1, 1]} : vector<1x128xf32> to vector<1x64xf32>
    %462 = vector.extract_strided_slice %460 {offsets = [0, 0], sizes = [1, 64], strides = [1, 1]} : vector<1x96xf32> to vector<1x64xf32>
    %463 = arith.addf %461, %462 : vector<1x64xf32>
    %464 = arith.negf %463 : vector<1x64xf32>
    %465 = math.exp %464 : vector<1x64xf32>
    %cst_119 = arith.constant 1.000000e+00 : f32
    %466 = vector.broadcast %cst_119 : f32 to vector<1x64xf32>
    %467 = arith.addf %466, %465 : vector<1x64xf32>
    %468 = arith.divf %466, %467 : vector<1x64xf32>
    %469 = vector.extract_strided_slice %468 {offsets = [0, 0], sizes = [1, 32], strides = [1, 1]} : vector<1x64xf32> to vector<1x32xf32>
    %470 = vector.extract_strided_slice %468 {offsets = [0, 32], sizes = [1, 32], strides = [1, 1]} : vector<1x64xf32> to vector<1x32xf32>
    %471 = vector.extract_strided_slice %459 {offsets = [0, 64], sizes = [1, 32], strides = [1, 1]} : vector<1x128xf32> to vector<1x32xf32>
    %472 = vector.extract_strided_slice %460 {offsets = [0, 64], sizes = [1, 32], strides = [1, 1]} : vector<1x96xf32> to vector<1x32xf32>
    %473 = arith.mulf %469, %472 : vector<1x32xf32>
    %474 = arith.addf %471, %473 : vector<1x32xf32>
    %475 = math.tanh %474 : vector<1x32xf32>
    %cst_120 = arith.constant 1.000000e+00 : f32
    %476 = vector.broadcast %cst_120 : f32 to vector<1x32xf32>
    %477 = arith.subf %476, %470 : vector<1x32xf32>
    %478 = arith.mulf %477, %475 : vector<1x32xf32>
    %479 = arith.mulf %470, %420 : vector<1x32xf32>
    %480 = arith.addf %478, %479 : vector<1x32xf32>
    %cst_121 = arith.constant dense<0.000000e+00> : vector<1x256xf32>
    %481 = tpu.matmul %480, %11, %cst_121 {dimension_numbers = #tpu.dot_dimension_numbers<[1], [0], [0], [1], [0, 0, 1, 1], [], []>} : vector<1x32xf32>, vector<32x256xf32>, vector<1x256xf32> -> vector<1x256xf32>
    %482 = arith.addf %481, %12 : vector<1x256xf32>
    %483 = vector.extract_strided_slice %482 {offsets = [0, 112], sizes = [1, 64], strides = [1, 1]} : vector<1x256xf32> to vector<1x64xf32>
    %cst_122 = arith.constant dense<0xFF800000> : vector<1xf32>
    %484 = vector.multi_reduction <maximumf>, %483, %cst_122 [1] : vector<1x64xf32> to vector<1xf32>
    %485 = vector.shape_cast %484 : vector<1xf32> to vector<1x1xf32>
    %486 = vector.broadcast %485 : vector<1x1xf32> to vector<1x64xf32>
    %487 = arith.subf %483, %486 : vector<1x64xf32>
    %488 = math.exp %487 : vector<1x64xf32>
    %cst_123 = arith.constant dense<0.000000e+00> : vector<1xf32>
    %489 = vector.multi_reduction <add>, %488, %cst_123 [1] : vector<1x64xf32> to vector<1xf32>
    %490 = vector.shape_cast %489 : vector<1xf32> to vector<1x1xf32>
    %491 = math.log %490 : vector<1x1xf32>
    %492 = vector.broadcast %491 : vector<1x1xf32> to vector<1x64xf32>
    %493 = arith.subf %487, %492 : vector<1x64xf32>
    %cst_124 = arith.constant 0.000000e+00 : f32
    %494 = vector.broadcast %cst_124 : f32 to vector<1x16xf32>
    %495 = tpu.concatenate %493, %480, %451, %494 in 1 : vector<1x64xf32>, vector<1x32xf32>, vector<1x16xf32>, vector<1x16xf32> -> vector<1x128xf32>
    %496 = arith.index_cast %c7_i32 : i32 to index
    %c0_125 = arith.constant 0 : index
    %497 = vector.load %arg6[%496, %c0_125] : memref<8x128xf32, #tpu.memory_space<vmem>>, vector<1x128xf32>
    tpu.vector_store %arg6[%496, %c0_125], %495 {strides = array<i32>} : memref<8x128xf32, #tpu.memory_space<vmem>>, vector<1x128xf32>,
    %c8_i32_126 = arith.constant 8 : i32
    return
  }
  func.func @transform_0(%arg0: i32, %arg1: memref<8xi32, #tpu.memory_space<smem>>) -> (i32, i32) {
    %c0_i32 = arith.constant 0 : i32
    %c0_i32_0 = arith.constant 0 : i32
    %c0_i32_1 = arith.constant 0 : i32
    return %c0_i32, %c0_i32_0 : i32, i32
  }
  func.func @transform_1(%arg0: i32, %arg1: memref<8xi32, #tpu.memory_space<smem>>) -> (i32, i32) {
    %c0_i32 = arith.constant 0 : i32
    %c0_i32_0 = arith.constant 0 : i32
    %c0_i32_1 = arith.constant 0 : i32
    return %c0_i32, %c0_i32_0 : i32, i32
  }
  func.func @transform_2(%arg0: i32, %arg1: memref<8xi32, #tpu.memory_space<smem>>) -> (i32, i32) {
    %c0_i32 = arith.constant 0 : i32
    %c0_i32_0 = arith.constant 0 : i32
    %c0_i32_1 = arith.constant 0 : i32
    return %c0_i32, %c0_i32_0 : i32, i32
  }
  func.func @transform_3(%arg0: i32, %arg1: memref<8xi32, #tpu.memory_space<smem>>) -> (i32, i32) {
    %c0_i32 = arith.constant 0 : i32
    %c0_i32_0 = arith.constant 0 : i32
    %c0_i32_1 = arith.constant 0 : i32
    return %c0_i32, %c0_i32_0 : i32, i32
  }
  func.func @transform_4(%arg0: i32, %arg1: memref<8xi32, #tpu.memory_space<smem>>) -> (i32, i32) {
    %c0_i32 = arith.constant 0 : i32
    %c0_i32_0 = arith.constant 0 : i32
    %c0_i32_1 = arith.constant 0 : i32
    return %c0_i32, %c0_i32_0 : i32, i32
  }
}

</mosaic_0001>

<llo_original>
// kernel: tpu_custom_call.1
$region0: #{tpu_custom_call.1}
  #allocation0 [shape = 'u32[]', space=smem, size = 0x4, offset = 0x4, fixed_abs, tag = 'smem constant byte address 0x4 - core index']
  #allocation1 [shape = 'u32[72,128]{1,0:T(1,128)}', space=vmem, size = 0x9000, scoped, tag = 'internal scratch']
  #allocation2 [shape = 'f32[8,32]{1,0:T(8,128)}', space=vmem, size = 0x1000, scoped, tag = 'scratch operand']
  #allocation3 [shape = 'f32[8,128]{1,0:T(8,128)}', space=vmem, size = 0x1000, scoped, tag = 'scratch operand']
  #allocation4 [shape = 's32[1]{0}', space=sflag, size = 0x4, scoped, tag = 'scoped memory for tpu_custom_call.1']
  #allocation5 [shape = 'u8[512]{0}', space=smem, size = 0x200, scoped, tag = 'prefetched SMEM operand 0']
  %s0 = inlined_call_operand.vmem [shape: s32[8], index: 0, kind: input, shape index: {}]
  %s1 = inlined_call_operand.vmem [shape: f32[1,32], index: 1, kind: input, shape index: {}]
  %s2 = inlined_call_operand.vmem [shape: f32[16,32], index: 2, kind: input, shape index: {}]
  %s3 = inlined_call_operand.vmem [shape: f32[64,32], index: 3, kind: input, shape index: {}]
  %s4 = inlined_call_operand.hbm [shape: f32[40,640], index: 4, kind: input, shape index: {}]
  %s5 = inlined_call_operand.hbm [shape: f32[8,128], index: 5, kind: output, shape index: {}]
  %s6 = sld [smem:[#allocation0]]
  $region37: #{tpu_custom_call.1} parent=0
    _
  %s8 = ssub.s32 1, %s6
  %s9 = scalar_select 0, %s8, %s6
  %s11 = sshll.u32 %s0, 4
  %s12 = int_to_ptr.vmem [resolvable:$true] %s11
  %14 = dma.vmem_to_smem %s12, 16, [#allocation5], [#allocation4]
  %16 = dma.done [#allocation4], 16
  %17 = sfence
  $region1: #{tpu_custom_call.1} parent=0
    #allocation6 [shape = 'u8[102400]{0}', space=vmem, size = 0x19000, scoped, tag = 'input window, operand 4, single buffered']
    #allocation7 [shape = 's32[1]{0}', space=sflag, size = 0x4, scoped, tag = 'scoped memory for tpu_custom_call.1']
    #allocation8 [shape = 's32[1]{0}', space=sflag, size = 0x4, scoped, tag = 'scoped memory for tpu_custom_call.1']
    #allocation9 [shape = 'u8[4096]{0}', space=vmem, size = 0x1000, scoped, tag = 'output window, operand 0, single buffered']
    %18 = vsyncpa [#allocation7], 0
    %19 = vsyncpa [#allocation8], 0
    // Predicated region
    $region2: #{tpu_custom_call.1} parent=1 // pred_check
      _
    $region3: #{tpu_custom_call.1} parent=1 // pred_check_branch
      %21 = sbr.rel (0) target = $region5
    $region4: #{tpu_custom_call.1} parent=1 // pred_region
      _
    $region5: #{tpu_custom_call.1} parent=1 // pred_fallthru
      _
    // Predicated region
    $region6: #{tpu_custom_call.1} parent=1 // pred_check
      _
    $region7: #{tpu_custom_call.1} parent=1 // pred_check_branch
      %23 = sbr.rel (0) target = $region9
    $region8: #{tpu_custom_call.1} parent=1 // pred_region
      _
    $region9: #{tpu_custom_call.1} parent=1 // pred_fallthru
      _
    // Predicated region
    $region10: #{tpu_custom_call.1} parent=1 // pred_check
      _
    $region11: #{tpu_custom_call.1} parent=1 // pred_check_branch
      %25 = sbr.rel (0) target = $region13
    $region12: #{tpu_custom_call.1} parent=1 // pred_region
      _
    $region13: #{tpu_custom_call.1} parent=1 // pred_fallthru
      _
    // Predicated region
    $region14: #{tpu_custom_call.1} parent=1 // pred_check
      _
    $region15: #{tpu_custom_call.1} parent=1 // pred_check_branch
      %27 = sbr.rel (0) target = $region17
    $region16: #{tpu_custom_call.1} parent=1 // pred_region
      %29 = vsyncadd [#allocation7], 0
      %s30 = sshll.u32 %s4, 4
      %s31 = int_to_ptr.hbm [resolvable:$true] %s30
      %s32 = sshll.u32 [#allocation6], 4
      %s33 = int_to_ptr.vmem [resolvable:$true] %s32
      %38 = dma.hbm_to_vmem [thread:$0]  %s31, 3200, %s33, [#allocation7], 640, 640, 40
    $region17: #{tpu_custom_call.1} parent=1 // pred_fallthru
      _
    // Predicated region
    $region18: #{tpu_custom_call.1} parent=1 // pred_check
      _
    $region19: #{tpu_custom_call.1} parent=1 // pred_check_branch
      %40 = sbr.rel (0) target = $region21
    $region20: #{tpu_custom_call.1} parent=1 // pred_region
      %42 = dma.done [#allocation7], 3200
    $region21: #{tpu_custom_call.1} parent=1 // pred_fallthru
      _
    loop: start=0, step=1, limit=8
    $region22: #{tpu_custom_call.1} parent=1 // loop_pre_header
      _
    $region23: #{tpu_custom_call.1} parent=1 // loop_header
      %s44 = sphi 0, %s48
      %p45 = scmp.ge.s32.totalorder %s44, 8
    $region24: #{tpu_custom_call.1} parent=1 // loop_header_branch
      %47 = sbr.rel (%p45) target = $region28
    $region25: #{tpu_custom_call.1} parent=1 // loop_body
      %s49 = sld [smem:[#allocation5 + %s44]]
      %s50 = scalar_lea.vmem %s3, %s49
      %v51 = vld [vmem:[%s50] sm:$0x1]
      %s52 = scalar_lea.vmem [#allocation2], %s44
      %vm53 = vcmask 253952
      %54 = vst.msk [vmem:[%s52] sm:$0x1] %vm53, %v51
    $region26: #{tpu_custom_call.1} parent=1 // loop_footer
      %s48 = sadd.s32 1, %s44
    $region27: #{tpu_custom_call.1} parent=1 // loop_footer_branch
      %43 = sbr.rel target = $region23
    $region28: #{tpu_custom_call.1} parent=1 // loop_exit
      _
    %v55 = vld [vmem:[#allocation2] sm:$0xff]
    %v56 = vld [vmem:[#allocation6] sm:$0xff]
    %v57 = vld [vmem:[#allocation6 + $0x28] sm:$0xff]
    %v58 = vld [vmem:[#allocation6 + $0x50] sm:$0xff]
    %v59 = vld [vmem:[#allocation6 + $0x78] sm:$0xff]
    %v60 = vld [vmem:[#allocation6 + $0xa0] ss:$0 sm:$0xff]
    %vm61 = vcmask 261120
    %v63 = vsel %vm61, %v55, 0
    %65 = vmatpush.msra.mxu0 0.0
    %66 = vmatpush.msra.mxu0 0.0
    %67 = vmatpush.msra.mxu0 0.0
    %68 = vmatpush.msra.mxu0 0.0
    %69 = vmatpush.msra.mxu0 0.0
    %70 = vmatpush.msra.mxu0 0.0
    %71 = vmatpush.msra.mxu0 0.0
    %72 = vmatpush.msra.mxu0 0.0
    %73 = vmatpush.msra.mxu0 0.0
    %74 = vmatpush.msra.mxu0 0.0
    %75 = vmatpush.msra.mxu0 0.0
    %76 = vmatpush.msra.mxu0 0.0
    %77 = vmatpush.msra.mxu0 %v59
    %78 = vmatpush.msra.mxu0 %v58
    %79 = vmatpush.msra.mxu0 %v57
    %80 = vmatpush.msra.mxu0 %v56
    %81 = vmatmul.f32.gmra.mxu0 %v63
    %v82 = vpop.f32.mrf.mxu0
    %v83 = vadd.f32 %v60, %v82
    %84 = vdwg.mxu0
    %85 = vst [vmem:[#allocation3] sm:$0xff] %v83
    %v86 = vld [vmem:[%s2] sm:$0xff]
    %v87 = vld [vmem:[%s2 + $0x8] sm:$0xff]
    %v88 = vld [vmem:[#allocation6 + $0x20] sm:$0xff]
    %v89 = vld [vmem:[#allocation6 + $0x48] sm:$0xff]
    %v90 = vld [vmem:[#allocation6 + $0x70] sm:$0xff]
    %v91 = vld [vmem:[#allocation6 + $0x98] sm:$0xff]
    %v93 = vsel %vm61, %v86, 0
    %v96 = vsel %vm61, %v87, 0
    %98 = vmatpush.msra.mxu0 0.0
    %99 = vmatpush.msra.mxu0 0.0
    %100 = vmatpush.msra.mxu0 0.0
    %101 = vmatpush.msra.mxu0 0.0
    %102 = vmatpush.msra.mxu0 0.0
    %103 = vmatpush.msra.mxu0 0.0
    %104 = vmatpush.msra.mxu0 0.0
    %105 = vmatpush.msra.mxu0 0.0
    %106 = vmatpush.msra.mxu0 0.0
    %107 = vmatpush.msra.mxu0 0.0
    %108 = vmatpush.msra.mxu0 0.0
    %109 = vmatpush.msra.mxu0 0.0
    %110 = vmatpush.msra.mxu0 %v91
    %111 = vmatpush.msra.mxu0 %v90
    %112 = vmatpush.msra.mxu0 %v89
    %113 = vmatpush.msra.mxu0 %v88
    %114 = vmatmul.f32.gmra.mxu0 %v93
    %v115 = vpop.f32.mrf.mxu0
    %v116 = vadd.f32 0.0, %v115
    %117 = vmatmul.f32.gmra.mxu0 %v96
    %v118 = vpop.f32.mrf.mxu0
    %v119 = vadd.f32 0.0, %v118
    %120 = vdwg.mxu0
    %v121 = vld [vmem:[#allocation6 + $0x8] sm:$0xff]
    %v122 = vld [vmem:[#allocation6 + $0x10] sm:$0xff]
    %v123 = vld [vmem:[#allocation6 + $0x30] sm:$0xff]
    %v124 = vld [vmem:[#allocation6 + $0x38] sm:$0xff]
    %v125 = vld [vmem:[#allocation6 + $0x58] sm:$0xff]
    %v126 = vld [vmem:[#allocation6 + $0x60] sm:$0xff]
    %v127 = vld [vmem:[#allocation6 + $0x80] sm:$0xff]
    %v128 = vld [vmem:[#allocation6 + $0x88] sm:$0xff]
    %s129 = scalar_lea.vmem [#allocation6], 168
    %v130 = vld [vmem:[%s129] ss:$8 sm:$0x3]
    %v131 = vld [vmem:[#allocation6 + $0x18] sm:$0xff]
    %v132 = vld [vmem:[#allocation6 + $0x40] sm:$0xff]
    %v133 = vld [vmem:[#allocation6 + $0x68] sm:$0xff]
    %v134 = vld [vmem:[#allocation6 + $0x90] sm:$0xff]
    %v135 = vld [vmem:[#allocation6 + $0xb8] ss:$0 sm:$0xff]
    %v136 = vld [vmem:[%s1] sm:$0x1]
    %v138 = vperm.slane %v130, 0
    %v141 = vsel %vm61, %v136, 0
    %143 = vmatpush.msra.mxu0 0.0
    %144 = vmatpush.msra.mxu0 0.0
    %145 = vmatpush.msra.mxu0 0.0
    %146 = vmatpush.msra.mxu0 0.0
    %147 = vmatpush.msra.mxu0 0.0
    %148 = vmatpush.msra.mxu0 0.0
    %149 = vmatpush.msra.mxu0 0.0
    %150 = vmatpush.msra.mxu0 0.0
    %151 = vmatpush.msra.mxu0 0.0
    %152 = vmatpush.msra.mxu0 0.0
    %153 = vmatpush.msra.mxu0 0.0
    %154 = vmatpush.msra.mxu0 0.0
    %155 = vmatpush.msra.mxu0 %v127
    %156 = vmatpush.msra.mxu0 %v125
    %157 = vmatpush.msra.mxu0 %v123
    %158 = vmatpush.msra.mxu0 %v121
    %159 = vmatmul.f32.gmra.mxu0 %v141
    %v160 = vpop.f32.mrf.mxu0
    %v161 = vadd.f32 %v138, %v160
    %162 = vdwg.mxu0
    %v163 = vld [vmem:[#allocation3] sm:$0x1]
    %v164 = vadd.f32 %v163, %v161
    %vm165 = vcmask 122880
    %v166 = vsel %vm165, %v164, -inf
    %167 = vmax.xlane.f32.xlu0 %v166
    %v168 = vpop.xlane.xlu0 %167
    %v169 = vsub.f32 %v164, %v168
    %v170 = vmul.f32 %v169, 1.442695
    %v171 = vpow.pop %v170
    %v172 = vsel %vm165, %v171, 0.0
    %173 = vadd.xlane.f32.xlu0 %v172
    %v174 = vpop.xlane.xlu0 %173
    %v175 = vrcp.pop %v174
    %v176 = vmul.f32 %v174, %v175
    %v177 = vsub.f32 1.0, %v176
    %v178 = vmul.f32 %v175, %v177
    %v179 = vadd.f32 %v175, %v178
    %vm180 = vweird.f32 %v174
    %vm181 = vweird.f32 %v175
    %vm182 = vmor %vm180, %vm181
    %v183 = vsel %vm182, %v175, %v179
    %v184 = vand.u32 2147483647, %v174
    %vm185 = vcmp.eq.f32.partialorder %v184, 8.507059e+37
    %v186 = vand.u32 %v174, 2147483648
    %v187 = vor.u32 1.1754944e-38, %v186
    %v188 = vsel %vm185, %v187, %v183
    %v189 = vmul.f32 %v171, %v188
    %vm190 = vcmask 130048
    %v192 = vsel %vm190, %v189, 0
    %194 = vmatpush.msra.mxu0 0.0
    %195 = vmatpush.msra.mxu0 0.0
    %196 = vmatpush.msra.mxu0 0.0
    %197 = vmatpush.msra.mxu0 0.0
    %198 = vmatpush.msra.mxu0 0.0
    %199 = vmatpush.msra.mxu0 0.0
    %200 = vmatpush.msra.mxu0 0.0
    %201 = vmatpush.msra.mxu0 0.0
    %202 = vmatpush.msra.mxu0 0.0
    %203 = vmatpush.msra.mxu0 0.0
    %204 = vmatpush.msra.mxu0 0.0
    %205 = vmatpush.msra.mxu0 0.0
    %206 = vmatpush.msra.mxu0 0.0
    %207 = vmatpush.msra.mxu0 0.0
    %208 = vmatpush.msra.mxu0 %v119
    %209 = vmatpush.msra.mxu0 %v116
    %210 = vmatmul.f32.gmra.mxu0 %v192
    %v211 = vpop.f32.mrf.mxu0
    %v212 = vadd.f32 0.0, %v211
    %213 = vdwg.mxu0
    %215 = vrot.lane.b32.xlu0 %v212, 16
    %v216 = vpop.permute.xlu0 %215
    %v218 = vadd.f32 %v163, %v216
    %v219 = vmax.f32 %v218, 0.0
    %221 = vrot.lane.b32.xlu0 %v219, 112
    %v222 = vpop.permute.xlu0 %221
    %v223 = vsel %vm61, %v222, 0
    %225 = vmatpush.msra.mxu0 0.0
    %226 = vmatpush.msra.mxu0 0.0
    %227 = vmatpush.msra.mxu0 0.0
    %228 = vmatpush.msra.mxu0 0.0
    %229 = vmatpush.msra.mxu0 0.0
    %230 = vmatpush.msra.mxu0 0.0
    %231 = vmatpush.msra.mxu0 0.0
    %232 = vmatpush.msra.mxu0 0.0
    %233 = vmatpush.msra.mxu0 0.0
    %234 = vmatpush.msra.mxu0 0.0
    %235 = vmatpush.msra.mxu0 0.0
    %236 = vmatpush.msra.mxu0 0.0
    %237 = vmatpush.msra.mxu0 %v134
    %238 = vmatpush.msra.mxu0 %v133
    %239 = vmatpush.msra.mxu0 %v132
    %240 = vmatpush.msra.mxu0 %v131
    %241 = vmatmul.f32.gmra.mxu0 %v223
    %v242 = vpop.f32.mrf.mxu0
    %v243 = vadd.f32 %v135, %v242
    %244 = vdwg.mxu0
    %246 = vrot.lane.b32.xlu0 %v161, 112
    %v247 = vpop.permute.xlu0 %246
    %v249 = vadd.f32 %v243, %v247
    %v250 = vxor.u32 %v249, 2147483648
    %v251 = vmul.f32 %v250, 1.442695
    %v252 = vpow.pop %v251
    %v253 = vadd.f32 %v252, 1.0
    %v254 = vrcp.pop %v253
    %v255 = vmul.f32 %v253, %v254
    %v256 = vsub.f32 1.0, %v255
    %v257 = vmul.f32 %v254, %v256
    %v258 = vadd.f32 %v254, %v257
    %vm259 = vweird.f32 %v253
    %vm260 = vweird.f32 %v254
    %vm261 = vmor %vm259, %vm260
    %v262 = vsel %vm261, %v254, %v258
    %v263 = vand.u32 2147483647, %v253
    %vm264 = vcmp.eq.f32.partialorder %v263, 8.507059e+37
    %v265 = vand.u32 %v253, 2147483648
    %v266 = vor.u32 1.1754944e-38, %v265
    %v267 = vsel %vm264, %v266, %v262
    %v268 = vmul.f32 1.0, %v267
    %269 = vrot.lane.b32.xlu0 %v161, 48
    %v270 = vpop.permute.xlu0 %269
    %v272 = vmul.f32 %v268, %v270
    %274 = vrot.lane.b32.xlu0 %v272, 64
    %v275 = vpop.permute.xlu0 %274
    %v277 = vadd.f32 %v243, %v275
    %v278 = vtanh.pop %v277
    %v279 = vsub.f32 1.0, %v268
    %281 = vrot.lane.b32.xlu0 %v278, 96
    %v282 = vpop.permute.xlu0 %281
    %v284 = vmul.f32 %v279, %v282
    %v285 = vperm.slane %v136, 0
    %286 = vrot.lane.b32.xlu0 %v285, 32
    %v287 = vpop.permute.xlu0 %286
    %v289 = vmul.f32 %v268, %v287
    %v290 = vadd.f32 %v284, %v289
    %292 = vrot.lane.b32.xlu0 %v290, 96
    %v293 = vpop.permute.xlu0 %292
    %v294 = vperm.slane %v130, 1
    %v296 = vsel %vm61, %v293, 0
    %298 = vmatpush.msra.mxu0 0.0
    %299 = vmatpush.msra.mxu0 0.0
    %300 = vmatpush.msra.mxu0 0.0
    %301 = vmatpush.msra.mxu0 0.0
    %302 = vmatpush.msra.mxu0 0.0
    %303 = vmatpush.msra.mxu0 0.0
    %304 = vmatpush.msra.mxu0 0.0
    %305 = vmatpush.msra.mxu0 0.0
    %306 = vmatpush.msra.mxu0 0.0
    %307 = vmatpush.msra.mxu0 0.0
    %308 = vmatpush.msra.mxu0 0.0
    %309 = vmatpush.msra.mxu0 0.0
    %310 = vmatpush.msra.mxu0 %v127
    %311 = vmatpush.msra.mxu0 %v125
    %312 = vmatpush.msra.mxu0 %v123
    %313 = vmatpush.msra.mxu0 %v121
    %314 = vmatmul.f32.gmra.mxu0 %v296
    %v315 = vpop.f32.mrf.mxu0
    %v316 = vadd.f32 %v138, %v315
    %317 = vdwg.mxu0
    %318 = vmatpush.msra.mxu0 0.0
    %319 = vmatpush.msra.mxu0 0.0
    %320 = vmatpush.msra.mxu0 0.0
    %321 = vmatpush.msra.mxu0 0.0
    %322 = vmatpush.msra.mxu0 0.0
    %323 = vmatpush.msra.mxu0 0.0
    %324 = vmatpush.msra.mxu0 0.0
    %325 = vmatpush.msra.mxu0 0.0
    %326 = vmatpush.msra.mxu0 0.0
    %327 = vmatpush.msra.mxu0 0.0
    %328 = vmatpush.msra.mxu0 0.0
    %329 = vmatpush.msra.mxu0 0.0
    %330 = vmatpush.msra.mxu0 %v128
    %331 = vmatpush.msra.mxu0 %v126
    %332 = vmatpush.msra.mxu0 %v124
    %333 = vmatpush.msra.mxu0 %v122
    %334 = vmatmul.f32.gmra.mxu0 %v296
    %v335 = vpop.f32.mrf.mxu0
    %v336 = vadd.f32 %v294, %v335
    %337 = vdwg.mxu0
    %vm338 = vcmask 1041280
    %v339 = vsel %vm338, %v316, -inf
    %vm340 = vcmask 385024
    %v341 = vsel %vm340, %v336, -inf
    %v342 = vmax.f32 %v339, %v341
    %343 = vmax.xlane.f32.xlu0 %v342
    %v344 = vpop.xlane.xlu0 %343
    %v345 = vsub.f32 %v316, %v344
    %v346 = vsub.f32 %v336, %v344
    %v347 = vmul.f32 %v345, 1.442695
    %v348 = vpow.pop %v347
    %v349 = vmul.f32 %v346, 1.442695
    %v350 = vpow.pop %v349
    %353 = vrot.lane.b32.xlu0 %v348, 16
    %v354 = vpop.permute.xlu0 %353
    %355 = vrot.lane.b32.xlu0 %v350, 16
    %v356 = vpop.permute.xlu0 %355
    %v357 = vsel %vm190, %v354, %v356
    %vm359 = vcmask 516096
    %v360 = vsel %vm359, %v357, 0.0
    %361 = vadd.xlane.f32.xlu0 %v360
    %v362 = vpop.xlane.xlu0 %361
    %v363 = vlog2.pop %v362
    %v364 = vmul.f32 %v363, 0.6931472
    %v365 = vsub.f32 %v345, %v364
    %v366 = vsub.f32 %v346, %v364
    %369 = vrot.lane.b32.xlu0 %v365, 16
    %v370 = vpop.permute.xlu0 %369
    %371 = vrot.lane.b32.xlu0 %v366, 16
    %v372 = vpop.permute.xlu0 %371
    %v373 = vsel %vm190, %v370, %v372
    %375 = vrot.lane.b32.xlu0 %v290, 32
    %v376 = vpop.permute.xlu0 %375
    %378 = vrot.lane.b32.xlu0 %v189, 96
    %v379 = vpop.permute.xlu0 %378
    %vm381 = vcmask 523264
    %v382 = vsel %vm381, %v373, %v376
    %vm383 = vcmask 785408
    %v384 = vsel %vm383, %v382, %v379
    %vm385 = vcmask 916480
    %v386 = vsel %vm385, %v384, 0.0
    %387 = vst [vmem:[#allocation9] sm:$0x1] %v386
    %v388 = vld [vmem:[#allocation3 + $0x1] sm:$0x1]
    %v389 = vadd.f32 %v388, %v316
    %v390 = vsel %vm165, %v389, -inf
    %391 = vmax.xlane.f32.xlu0 %v390
    %v392 = vpop.xlane.xlu0 %391
    %v393 = vsub.f32 %v389, %v392
    %v394 = vmul.f32 %v393, 1.442695
    %v395 = vpow.pop %v394
    %v396 = vsel %vm165, %v395, 0.0
    %397 = vadd.xlane.f32.xlu0 %v396
    %v398 = vpop.xlane.xlu0 %397
    %v399 = vrcp.pop %v398
    %v400 = vmul.f32 %v398, %v399
    %v401 = vsub.f32 1.0, %v400
    %v402 = vmul.f32 %v399, %v401
    %v403 = vadd.f32 %v399, %v402
    %vm404 = vweird.f32 %v398
    %vm405 = vweird.f32 %v399
    %vm406 = vmor %vm404, %vm405
    %v407 = vsel %vm406, %v399, %v403
    %v408 = vand.u32 2147483647, %v398
    %vm409 = vcmp.eq.f32.partialorder %v408, 8.507059e+37
    %v410 = vand.u32 %v398, 2147483648
    %v411 = vor.u32 1.1754944e-38, %v410
    %v412 = vsel %vm409, %v411, %v407
    %v413 = vmul.f32 %v395, %v412
    %v415 = vsel %vm190, %v413, 0
    %417 = vmatpush.msra.mxu0 0.0
    %418 = vmatpush.msra.mxu0 0.0
    %419 = vmatpush.msra.mxu0 0.0
    %420 = vmatpush.msra.mxu0 0.0
    %421 = vmatpush.msra.mxu0 0.0
    %422 = vmatpush.msra.mxu0 0.0
    %423 = vmatpush.msra.mxu0 0.0
    %424 = vmatpush.msra.mxu0 0.0
    %425 = vmatpush.msra.mxu0 0.0
    %426 = vmatpush.msra.mxu0 0.0
    %427 = vmatpush.msra.mxu0 0.0
    %428 = vmatpush.msra.mxu0 0.0
    %429 = vmatpush.msra.mxu0 0.0
    %430 = vmatpush.msra.mxu0 0.0
    %431 = vmatpush.msra.mxu0 %v119
    %432 = vmatpush.msra.mxu0 %v116
    %433 = vmatmul.f32.gmra.mxu0 %v415
    %v434 = vpop.f32.mrf.mxu0
    %v435 = vadd.f32 0.0, %v434
    %436 = vdwg.mxu0
    %438 = vrot.lane.b32.xlu0 %v435, 16
    %v439 = vpop.permute.xlu0 %438
    %v441 = vadd.f32 %v388, %v439
    %v442 = vmax.f32 %v441, 0.0
    %444 = vrot.lane.b32.xlu0 %v442, 112
    %v445 = vpop.permute.xlu0 %444
    %v446 = vsel %vm61, %v445, 0
    %448 = vmatpush.msra.mxu0 0.0
    %449 = vmatpush.msra.mxu0 0.0
    %450 = vmatpush.msra.mxu0 0.0
    %451 = vmatpush.msra.mxu0 0.0
    %452 = vmatpush.msra.mxu0 0.0
    %453 = vmatpush.msra.mxu0 0.0
    %454 = vmatpush.msra.mxu0 0.0
    %455 = vmatpush.msra.mxu0 0.0
    %456 = vmatpush.msra.mxu0 0.0
    %457 = vmatpush.msra.mxu0 0.0
    %458 = vmatpush.msra.mxu0 0.0
    %459 = vmatpush.msra.mxu0 0.0
    %460 = vmatpush.msra.mxu0 %v134
    %461 = vmatpush.msra.mxu0 %v133
    %462 = vmatpush.msra.mxu0 %v132
    %463 = vmatpush.msra.mxu0 %v131
    %464 = vmatmul.f32.gmra.mxu0 %v446
    %v465 = vpop.f32.mrf.mxu0
    %v466 = vadd.f32 %v135, %v465
    %467 = vdwg.mxu0
    %469 = vrot.lane.b32.xlu0 %v316, 112
    %v470 = vpop.permute.xlu0 %469
    %v472 = vadd.f32 %v466, %v470
    %v473 = vxor.u32 %v472, 2147483648
    %v474 = vmul.f32 %v473, 1.442695
    %v475 = vpow.pop %v474
    %v476 = vadd.f32 %v475, 1.0
    %v477 = vrcp.pop %v476
    %v478 = vmul.f32 %v476, %v477
    %v479 = vsub.f32 1.0, %v478
    %v480 = vmul.f32 %v477, %v479
    %v481 = vadd.f32 %v477, %v480
    %vm482 = vweird.f32 %v476
    %vm483 = vweird.f32 %v477
    %vm484 = vmor %vm482, %vm483
    %v485 = vsel %vm484, %v477, %v481
    %v486 = vand.u32 2147483647, %v476
    %vm487 = vcmp.eq.f32.partialorder %v486, 8.507059e+37
    %v488 = vand.u32 %v476, 2147483648
    %v489 = vor.u32 1.1754944e-38, %v488
    %v490 = vsel %vm487, %v489, %v485
    %v491 = vmul.f32 1.0, %v490
    %492 = vrot.lane.b32.xlu0 %v316, 48
    %v493 = vpop.permute.xlu0 %492
    %v495 = vmul.f32 %v491, %v493
    %497 = vrot.lane.b32.xlu0 %v495, 64
    %v498 = vpop.permute.xlu0 %497
    %v500 = vadd.f32 %v466, %v498
    %v501 = vtanh.pop %v500
    %v502 = vsub.f32 1.0, %v491
    %504 = vrot.lane.b32.xlu0 %v501, 96
    %v505 = vpop.permute.xlu0 %504
    %v507 = vmul.f32 %v502, %v505
    %v508 = vmul.f32 %v491, %v290
    %v509 = vadd.f32 %v507, %v508
    %511 = vrot.lane.b32.xlu0 %v509, 96
    %v512 = vpop.permute.xlu0 %511
    %v513 = vsel %vm61, %v512, 0
    %515 = vmatpush.msra.mxu0 0.0
    %516 = vmatpush.msra.mxu0 0.0
    %517 = vmatpush.msra.mxu0 0.0
    %518 = vmatpush.msra.mxu0 0.0
    %519 = vmatpush.msra.mxu0 0.0
    %520 = vmatpush.msra.mxu0 0.0
    %521 = vmatpush.msra.mxu0 0.0
    %522 = vmatpush.msra.mxu0 0.0
    %523 = vmatpush.msra.mxu0 0.0
    %524 = vmatpush.msra.mxu0 0.0
    %525 = vmatpush.msra.mxu0 0.0
    %526 = vmatpush.msra.mxu0 0.0
    %527 = vmatpush.msra.mxu0 %v127
    %528 = vmatpush.msra.mxu0 %v125
    %529 = vmatpush.msra.mxu0 %v123
    %530 = vmatpush.msra.mxu0 %v121
    %531 = vmatmul.f32.gmra.mxu0 %v513
    %v532 = vpop.f32.mrf.mxu0
    %v533 = vadd.f32 %v138, %v532
    %534 = vdwg.mxu0
    %535 = vmatpush.msra.mxu0 0.0
    %536 = vmatpush.msra.mxu0 0.0
    %537 = vmatpush.msra.mxu0 0.0
    %538 = vmatpush.msra.mxu0 0.0
    %539 = vmatpush.msra.mxu0 0.0
    %540 = vmatpush.msra.mxu0 0.0
    %541 = vmatpush.msra.mxu0 0.0
    %542 = vmatpush.msra.mxu0 0.0
    %543 = vmatpush.msra.mxu0 0.0
    %544 = vmatpush.msra.mxu0 0.0
    %545 = vmatpush.msra.mxu0 0.0
    %546 = vmatpush.msra.mxu0 0.0
    %547 = vmatpush.msra.mxu0 %v128
    %548 = vmatpush.msra.mxu0 %v126
    %549 = vmatpush.msra.mxu0 %v124
    %550 = vmatpush.msra.mxu0 %v122
    %551 = vmatmul.f32.gmra.mxu0 %v513
    %v552 = vpop.f32.mrf.mxu0
    %v553 = vadd.f32 %v294, %v552
    %554 = vdwg.mxu0
    %v555 = vsel %vm338, %v533, -inf
    %v556 = vsel %vm340, %v553, -inf
    %v557 = vmax.f32 %v555, %v556
    %558 = vmax.xlane.f32.xlu0 %v557
    %v559 = vpop.xlane.xlu0 %558
    %v560 = vsub.f32 %v533, %v559
    %v561 = vsub.f32 %v553, %v559
    %v562 = vmul.f32 %v560, 1.442695
    %v563 = vpow.pop %v562
    %v564 = vmul.f32 %v561, 1.442695
    %v565 = vpow.pop %v564
    %568 = vrot.lane.b32.xlu0 %v563, 16
    %v569 = vpop.permute.xlu0 %568
    %570 = vrot.lane.b32.xlu0 %v565, 16
    %v571 = vpop.permute.xlu0 %570
    %v572 = vsel %vm190, %v569, %v571
    %v574 = vsel %vm359, %v572, 0.0
    %575 = vadd.xlane.f32.xlu0 %v574
    %v576 = vpop.xlane.xlu0 %575
    %v577 = vlog2.pop %v576
    %v578 = vmul.f32 %v577, 0.6931472
    %v579 = vsub.f32 %v560, %v578
    %v580 = vsub.f32 %v561, %v578
    %583 = vrot.lane.b32.xlu0 %v579, 16
    %v584 = vpop.permute.xlu0 %583
    %585 = vrot.lane.b32.xlu0 %v580, 16
    %v586 = vpop.permute.xlu0 %585
    %v587 = vsel %vm190, %v584, %v586
    %589 = vrot.lane.b32.xlu0 %v509, 32
    %v590 = vpop.permute.xlu0 %589
    %592 = vrot.lane.b32.xlu0 %v413, 96
    %v593 = vpop.permute.xlu0 %592
    %v595 = vsel %vm381, %v587, %v590
    %v596 = vsel %vm383, %v595, %v593
    %v597 = vsel %vm385, %v596, 0.0
    %598 = vst [vmem:[#allocation9 + $0x1] sm:$0x1] %v597
    %v599 = vld [vmem:[#allocation3 + $0x2] sm:$0x1]
    %v600 = vadd.f32 %v599, %v533
    %v601 = vsel %vm165, %v600, -inf
    %602 = vmax.xlane.f32.xlu0 %v601
    %v603 = vpop.xlane.xlu0 %602
    %v604 = vsub.f32 %v600, %v603
    %v605 = vmul.f32 %v604, 1.442695
    %v606 = vpow.pop %v605
    %v607 = vsel %vm165, %v606, 0.0
    %608 = vadd.xlane.f32.xlu0 %v607
    %v609 = vpop.xlane.xlu0 %608
    %v610 = vrcp.pop %v609
    %v611 = vmul.f32 %v609, %v610
    %v612 = vsub.f32 1.0, %v611
    %v613 = vmul.f32 %v610, %v612
    %v614 = vadd.f32 %v610, %v613
    %vm615 = vweird.f32 %v609
    %vm616 = vweird.f32 %v610
    %vm617 = vmor %vm615, %vm616
    %v618 = vsel %vm617, %v610, %v614
    %v619 = vand.u32 2147483647, %v609
    %vm620 = vcmp.eq.f32.partialorder %v619, 8.507059e+37
    %v621 = vand.u32 %v609, 2147483648
    %v622 = vor.u32 1.1754944e-38, %v621
    %v623 = vsel %vm620, %v622, %v618
    %v624 = vmul.f32 %v606, %v623
    %v626 = vsel %vm190, %v624, 0
    %628 = vmatpush.msra.mxu0 0.0
    %629 = vmatpush.msra.mxu0 0.0
    %630 = vmatpush.msra.mxu0 0.0
    %631 = vmatpush.msra.mxu0 0.0
    %632 = vmatpush.msra.mxu0 0.0
    %633 = vmatpush.msra.mxu0 0.0
    %634 = vmatpush.msra.mxu0 0.0
    %635 = vmatpush.msra.mxu0 0.0
    %636 = vmatpush.msra.mxu0 0.0
    %637 = vmatpush.msra.mxu0 0.0
    %638 = vmatpush.msra.mxu0 0.0
    %639 = vmatpush.msra.mxu0 0.0
    %640 = vmatpush.msra.mxu0 0.0
    %641 = vmatpush.msra.mxu0 0.0
    %642 = vmatpush.msra.mxu0 %v119
    %643 = vmatpush.msra.mxu0 %v116
    %644 = vmatmul.f32.gmra.mxu0 %v626
    %v645 = vpop.f32.mrf.mxu0
    %v646 = vadd.f32 0.0, %v645
    %647 = vdwg.mxu0
    %649 = vrot.lane.b32.xlu0 %v646, 16
    %v650 = vpop.permute.xlu0 %649
    %v652 = vadd.f32 %v599, %v650
    %v653 = vmax.f32 %v652, 0.0
    %655 = vrot.lane.b32.xlu0 %v653, 112
    %v656 = vpop.permute.xlu0 %655
    %v657 = vsel %vm61, %v656, 0
    %659 = vmatpush.msra.mxu0 0.0
    %660 = vmatpush.msra.mxu0 0.0
    %661 = vmatpush.msra.mxu0 0.0
    %662 = vmatpush.msra.mxu0 0.0
    %663 = vmatpush.msra.mxu0 0.0
    %664 = vmatpush.msra.mxu0 0.0
    %665 = vmatpush.msra.mxu0 0.0
    %666 = vmatpush.msra.mxu0 0.0
    %667 = vmatpush.msra.mxu0 0.0
    %668 = vmatpush.msra.mxu0 0.0
    %669 = vmatpush.msra.mxu0 0.0
    %670 = vmatpush.msra.mxu0 0.0
    %671 = vmatpush.msra.mxu0 %v134
    %672 = vmatpush.msra.mxu0 %v133
    %673 = vmatpush.msra.mxu0 %v132
    %674 = vmatpush.msra.mxu0 %v131
    %675 = vmatmul.f32.gmra.mxu0 %v657
    %v676 = vpop.f32.mrf.mxu0
    %v677 = vadd.f32 %v135, %v676
    %678 = vdwg.mxu0
    %680 = vrot.lane.b32.xlu0 %v533, 112
    %v681 = vpop.permute.xlu0 %680
    %v683 = vadd.f32 %v677, %v681
    %v684 = vxor.u32 %v683, 2147483648
    %v685 = vmul.f32 %v684, 1.442695
    %v686 = vpow.pop %v685
    %v687 = vadd.f32 %v686, 1.0
    %v688 = vrcp.pop %v687
    %v689 = vmul.f32 %v687, %v688
    %v690 = vsub.f32 1.0, %v689
    %v691 = vmul.f32 %v688, %v690
    %v692 = vadd.f32 %v688, %v691
    %vm693 = vweird.f32 %v687
    %vm694 = vweird.f32 %v688
    %vm695 = vmor %vm693, %vm694
    %v696 = vsel %vm695, %v688, %v692
    %v697 = vand.u32 2147483647, %v687
    %vm698 = vcmp.eq.f32.partialorder %v697, 8.507059e+37
    %v699 = vand.u32 %v687, 2147483648
    %v700 = vor.u32 1.1754944e-38, %v699
    %v701 = vsel %vm698, %v700, %v696
    %v702 = vmul.f32 1.0, %v701
    %703 = vrot.lane.b32.xlu0 %v533, 48
    %v704 = vpop.permute.xlu0 %703
    %v706 = vmul.f32 %v702, %v704
    %708 = vrot.lane.b32.xlu0 %v706, 64
    %v709 = vpop.permute.xlu0 %708
    %v711 = vadd.f32 %v677, %v709
    %v712 = vtanh.pop %v711
    %v713 = vsub.f32 1.0, %v702
    %715 = vrot.lane.b32.xlu0 %v712, 96
    %v716 = vpop.permute.xlu0 %715
    %v718 = vmul.f32 %v713, %v716
    %v719 = vmul.f32 %v702, %v509
    %v720 = vadd.f32 %v718, %v719
    %722 = vrot.lane.b32.xlu0 %v720, 96
    %v723 = vpop.permute.xlu0 %722
    %v724 = vsel %vm61, %v723, 0
    %726 = vmatpush.msra.mxu0 0.0
    %727 = vmatpush.msra.mxu0 0.0
    %728 = vmatpush.msra.mxu0 0.0
    %729 = vmatpush.msra.mxu0 0.0
    %730 = vmatpush.msra.mxu0 0.0
    %731 = vmatpush.msra.mxu0 0.0
    %732 = vmatpush.msra.mxu0 0.0
    %733 = vmatpush.msra.mxu0 0.0
    %734 = vmatpush.msra.mxu0 0.0
    %735 = vmatpush.msra.mxu0 0.0
    %736 = vmatpush.msra.mxu0 0.0
    %737 = vmatpush.msra.mxu0 0.0
    %738 = vmatpush.msra.mxu0 %v127
    %739 = vmatpush.msra.mxu0 %v125
    %740 = vmatpush.msra.mxu0 %v123
    %741 = vmatpush.msra.mxu0 %v121
    %742 = vmatmul.f32.gmra.mxu0 %v724
    %v743 = vpop.f32.mrf.mxu0
    %v744 = vadd.f32 %v138, %v743
    %745 = vdwg.mxu0
    %746 = vmatpush.msra.mxu0 0.0
    %747 = vmatpush.msra.mxu0 0.0
    %748 = vmatpush.msra.mxu0 0.0
    %749 = vmatpush.msra.mxu0 0.0
    %750 = vmatpush.msra.mxu0 0.0
    %751 = vmatpush.msra.mxu0 0.0
    %752 = vmatpush.msra.mxu0 0.0
    %753 = vmatpush.msra.mxu0 0.0
    %754 = vmatpush.msra.mxu0 0.0
    %755 = vmatpush.msra.mxu0 0.0
    %756 = vmatpush.msra.mxu0 0.0
    %757 = vmatpush.msra.mxu0 0.0
    %758 = vmatpush.msra.mxu0 %v128
    %759 = vmatpush.msra.mxu0 %v126
    %760 = vmatpush.msra.mxu0 %v124
    %761 = vmatpush.msra.mxu0 %v122
    %762 = vmatmul.f32.gmra.mxu0 %v724
    %v763 = vpop.f32.mrf.mxu0
    %v764 = vadd.f32 %v294, %v763
    %765 = vdwg.mxu0
    %v766 = vsel %vm338, %v744, -inf
    %v767 = vsel %vm340, %v764, -inf
    %v768 = vmax.f32 %v766, %v767
    %769 = vmax.xlane.f32.xlu0 %v768
    %v770 = vpop.xlane.xlu0 %769
    %v771 = vsub.f32 %v744, %v770
    %v772 = vsub.f32 %v764, %v770
    %v773 = vmul.f32 %v771, 1.442695
    %v774 = vpow.pop %v773
    %v775 = vmul.f32 %v772, 1.442695
    %v776 = vpow.pop %v775
    %779 = vrot.lane.b32.xlu0 %v774, 16
    %v780 = vpop.permute.xlu0 %779
    %781 = vrot.lane.b32.xlu0 %v776, 16
    %v782 = vpop.permute.xlu0 %781
    %v783 = vsel %vm190, %v780, %v782
    %v785 = vsel %vm359, %v783, 0.0
    %786 = vadd.xlane.f32.xlu0 %v785
    %v787 = vpop.xlane.xlu0 %786
    %v788 = vlog2.pop %v787
    %v789 = vmul.f32 %v788, 0.6931472
    %v790 = vsub.f32 %v771, %v789
    %v791 = vsub.f32 %v772, %v789
    %794 = vrot.lane.b32.xlu0 %v790, 16
    %v795 = vpop.permute.xlu0 %794
    %796 = vrot.lane.b32.xlu0 %v791, 16
    %v797 = vpop.permute.xlu0 %796
    %v798 = vsel %vm190, %v795, %v797
    %800 = vrot.lane.b32.xlu0 %v720, 32
    %v801 = vpop.permute.xlu0 %800
    %803 = vrot.lane.b32.xlu0 %v624, 96
    %v804 = vpop.permute.xlu0 %803
    %v806 = vsel %vm381, %v798, %v801
    %v807 = vsel %vm383, %v806, %v804
    %v808 = vsel %vm385, %v807, 0.0
    %809 = vst [vmem:[#allocation9 + $0x2] sm:$0x1] %v808
    %v810 = vld [vmem:[#allocation3 + $0x3] sm:$0x1]
    %v811 = vadd.f32 %v810, %v744
    %v812 = vsel %vm165, %v811, -inf
    %813 = vmax.xlane.f32.xlu0 %v812
    %v814 = vpop.xlane.xlu0 %813
    %v815 = vsub.f32 %v811, %v814
    %v816 = vmul.f32 %v815, 1.442695
    %v817 = vpow.pop %v816
    %v818 = vsel %vm165, %v817, 0.0
    %819 = vadd.xlane.f32.xlu0 %v818
    %v820 = vpop.xlane.xlu0 %819
    %v821 = vrcp.pop %v820
    %v822 = vmul.f32 %v820, %v821
    %v823 = vsub.f32 1.0, %v822
    %v824 = vmul.f32 %v821, %v823
    %v825 = vadd.f32 %v821, %v824
    %vm826 = vweird.f32 %v820
    %vm827 = vweird.f32 %v821
    %vm828 = vmor %vm826, %vm827
    %v829 = vsel %vm828, %v821, %v825
    %v830 = vand.u32 2147483647, %v820
    %vm831 = vcmp.eq.f32.partialorder %v830, 8.507059e+37
    %v832 = vand.u32 %v820, 2147483648
    %v833 = vor.u32 1.1754944e-38, %v832
    %v834 = vsel %vm831, %v833, %v829
    %v835 = vmul.f32 %v817, %v834
    %v837 = vsel %vm190, %v835, 0
    %839 = vmatpush.msra.mxu0 0.0
    %840 = vmatpush.msra.mxu0 0.0
    %841 = vmatpush.msra.mxu0 0.0
    %842 = vmatpush.msra.mxu0 0.0
    %843 = vmatpush.msra.mxu0 0.0
    %844 = vmatpush.msra.mxu0 0.0
    %845 = vmatpush.msra.mxu0 0.0
    %846 = vmatpush.msra.mxu0 0.0
    %847 = vmatpush.msra.mxu0 0.0
    %848 = vmatpush.msra.mxu0 0.0
    %849 = vmatpush.msra.mxu0 0.0
    %850 = vmatpush.msra.mxu0 0.0
    %851 = vmatpush.msra.mxu0 0.0
    %852 = vmatpush.msra.mxu0 0.0
    %853 = vmatpush.msra.mxu0 %v119
    %854 = vmatpush.msra.mxu0 %v116
    %855 = vmatmul.f32.gmra.mxu0 %v837
    %v856 = vpop.f32.mrf.mxu0
    %v857 = vadd.f32 0.0, %v856
    %858 = vdwg.mxu0
    %860 = vrot.lane.b32.xlu0 %v857, 16
    %v861 = vpop.permute.xlu0 %860
    %v863 = vadd.f32 %v810, %v861
    %v864 = vmax.f32 %v863, 0.0
    %866 = vrot.lane.b32.xlu0 %v864, 112
    %v867 = vpop.permute.xlu0 %866
    %v868 = vsel %vm61, %v867, 0
    %870 = vmatpush.msra.mxu0 0.0
    %871 = vmatpush.msra.mxu0 0.0
    %872 = vmatpush.msra.mxu0 0.0
    %873 = vmatpush.msra.mxu0 0.0
    %874 = vmatpush.msra.mxu0 0.0
    %875 = vmatpush.msra.mxu0 0.0
    %876 = vmatpush.msra.mxu0 0.0
    %877 = vmatpush.msra.mxu0 0.0
    %878 = vmatpush.msra.mxu0 0.0
    %879 = vmatpush.msra.mxu0 0.0
    %880 = vmatpush.msra.mxu0 0.0
    %881 = vmatpush.msra.mxu0 0.0
    %882 = vmatpush.msra.mxu0 %v134
    %883 = vmatpush.msra.mxu0 %v133
    %884 = vmatpush.msra.mxu0 %v132
    %885 = vmatpush.msra.mxu0 %v131
    %886 = vmatmul.f32.gmra.mxu0 %v868
    %v887 = vpop.f32.mrf.mxu0
    %v888 = vadd.f32 %v135, %v887
    %889 = vdwg.mxu0
    %891 = vrot.lane.b32.xlu0 %v744, 112
    %v892 = vpop.permute.xlu0 %891
    %v894 = vadd.f32 %v888, %v892
    %v895 = vxor.u32 %v894, 2147483648
    %v896 = vmul.f32 %v895, 1.442695
    %v897 = vpow.pop %v896
    %v898 = vadd.f32 %v897, 1.0
    %v899 = vrcp.pop %v898
    %v900 = vmul.f32 %v898, %v899
    %v901 = vsub.f32 1.0, %v900
    %v902 = vmul.f32 %v899, %v901
    %v903 = vadd.f32 %v899, %v902
    %vm904 = vweird.f32 %v898
    %vm905 = vweird.f32 %v899
    %vm906 = vmor %vm904, %vm905
    %v907 = vsel %vm906, %v899, %v903
    %v908 = vand.u32 2147483647, %v898
    %vm909 = vcmp.eq.f32.partialorder %v908, 8.507059e+37
    %v910 = vand.u32 %v898, 2147483648
    %v911 = vor.u32 1.1754944e-38, %v910
    %v912 = vsel %vm909, %v911, %v907
    %v913 = vmul.f32 1.0, %v912
    %914 = vrot.lane.b32.xlu0 %v744, 48
    %v915 = vpop.permute.xlu0 %914
    %v917 = vmul.f32 %v913, %v915
    %919 = vrot.lane.b32.xlu0 %v917, 64
    %v920 = vpop.permute.xlu0 %919
    %v922 = vadd.f32 %v888, %v920
    %v923 = vtanh.pop %v922
    %v924 = vsub.f32 1.0, %v913
    %926 = vrot.lane.b32.xlu0 %v923, 96
    %v927 = vpop.permute.xlu0 %926
    %v929 = vmul.f32 %v924, %v927
    %v930 = vmul.f32 %v913, %v720
    %v931 = vadd.f32 %v929, %v930
    %933 = vrot.lane.b32.xlu0 %v931, 96
    %v934 = vpop.permute.xlu0 %933
    %v935 = vsel %vm61, %v934, 0
    %937 = vmatpush.msra.mxu0 0.0
    %938 = vmatpush.msra.mxu0 0.0
    %939 = vmatpush.msra.mxu0 0.0
    %940 = vmatpush.msra.mxu0 0.0
    %941 = vmatpush.msra.mxu0 0.0
    %942 = vmatpush.msra.mxu0 0.0
    %943 = vmatpush.msra.mxu0 0.0
    %944 = vmatpush.msra.mxu0 0.0
    %945 = vmatpush.msra.mxu0 0.0
    %946 = vmatpush.msra.mxu0 0.0
    %947 = vmatpush.msra.mxu0 0.0
    %948 = vmatpush.msra.mxu0 0.0
    %949 = vmatpush.msra.mxu0 %v127
    %950 = vmatpush.msra.mxu0 %v125
    %951 = vmatpush.msra.mxu0 %v123
    %952 = vmatpush.msra.mxu0 %v121
    %953 = vmatmul.f32.gmra.mxu0 %v935
    %v954 = vpop.f32.mrf.mxu0
    %v955 = vadd.f32 %v138, %v954
    %956 = vdwg.mxu0
    %957 = vmatpush.msra.mxu0 0.0
    %958 = vmatpush.msra.mxu0 0.0
    %959 = vmatpush.msra.mxu0 0.0
    %960 = vmatpush.msra.mxu0 0.0
    %961 = vmatpush.msra.mxu0 0.0
    %962 = vmatpush.msra.mxu0 0.0
    %963 = vmatpush.msra.mxu0 0.0
    %964 = vmatpush.msra.mxu0 0.0
    %965 = vmatpush.msra.mxu0 0.0
    %966 = vmatpush.msra.mxu0 0.0
    %967 = vmatpush.msra.mxu0 0.0
    %968 = vmatpush.msra.mxu0 0.0
    %969 = vmatpush.msra.mxu0 %v128
    %970 = vmatpush.msra.mxu0 %v126
    %971 = vmatpush.msra.mxu0 %v124
    %972 = vmatpush.msra.mxu0 %v122
    %973 = vmatmul.f32.gmra.mxu0 %v935
    %v974 = vpop.f32.mrf.mxu0
    %v975 = vadd.f32 %v294, %v974
    %976 = vdwg.mxu0
    %v977 = vsel %vm338, %v955, -inf
    %v978 = vsel %vm340, %v975, -inf
    %v979 = vmax.f32 %v977, %v978
    %980 = vmax.xlane.f32.xlu0 %v979
    %v981 = vpop.xlane.xlu0 %980
    %v982 = vsub.f32 %v955, %v981
    %v983 = vsub.f32 %v975, %v981
    %v984 = vmul.f32 %v982, 1.442695
    %v985 = vpow.pop %v984
    %v986 = vmul.f32 %v983, 1.442695
    %v987 = vpow.pop %v986
    %990 = vrot.lane.b32.xlu0 %v985, 16
    %v991 = vpop.permute.xlu0 %990
    %992 = vrot.lane.b32.xlu0 %v987, 16
    %v993 = vpop.permute.xlu0 %992
    %v994 = vsel %vm190, %v991, %v993
    %v996 = vsel %vm359, %v994, 0.0
    %997 = vadd.xlane.f32.xlu0 %v996
    %v998 = vpop.xlane.xlu0 %997
    %v999 = vlog2.pop %v998
    %v1000 = vmul.f32 %v999, 0.6931472
    %v1001 = vsub.f32 %v982, %v1000
    %v1002 = vsub.f32 %v983, %v1000
    %1005 = vrot.lane.b32.xlu0 %v1001, 16
    %v1006 = vpop.permute.xlu0 %1005
    %1007 = vrot.lane.b32.xlu0 %v1002, 16
    %v1008 = vpop.permute.xlu0 %1007
    %v1009 = vsel %vm190, %v1006, %v1008
    %1011 = vrot.lane.b32.xlu0 %v931, 32
    %v1012 = vpop.permute.xlu0 %1011
    %1014 = vrot.lane.b32.xlu0 %v835, 96
    %v1015 = vpop.permute.xlu0 %1014
    %v1017 = vsel %vm381, %v1009, %v1012
    %v1018 = vsel %vm383, %v1017, %v1015
    %v1019 = vsel %vm385, %v1018, 0.0
    %1020 = vst [vmem:[#allocation9 + $0x3] sm:$0x1] %v1019
    %v1021 = vld [vmem:[#allocation3 + $0x4] sm:$0x1]
    %v1022 = vadd.f32 %v1021, %v955
    %v1023 = vsel %vm165, %v1022, -inf
    %1024 = vmax.xlane.f32.xlu0 %v1023
    %v1025 = vpop.xlane.xlu0 %1024
    %v1026 = vsub.f32 %v1022, %v1025
    %v1027 = vmul.f32 %v1026, 1.442695
    %v1028 = vpow.pop %v1027
    %v1029 = vsel %vm165, %v1028, 0.0
    %1030 = vadd.xlane.f32.xlu0 %v1029
    %v1031 = vpop.xlane.xlu0 %1030
    %v1032 = vrcp.pop %v1031
    %v1033 = vmul.f32 %v1031, %v1032
    %v1034 = vsub.f32 1.0, %v1033
    %v1035 = vmul.f32 %v1032, %v1034
    %v1036 = vadd.f32 %v1032, %v1035
    %vm1037 = vweird.f32 %v1031
    %vm1038 = vweird.f32 %v1032
    %vm1039 = vmor %vm1037, %vm1038
    %v1040 = vsel %vm1039, %v1032, %v1036
    %v1041 = vand.u32 2147483647, %v1031
    %vm1042 = vcmp.eq.f32.partialorder %v1041, 8.507059e+37
    %v1043 = vand.u32 %v1031, 2147483648
    %v1044 = vor.u32 1.1754944e-38, %v1043
    %v1045 = vsel %vm1042, %v1044, %v1040
    %v1046 = vmul.f32 %v1028, %v1045
    %v1048 = vsel %vm190, %v1046, 0
    %1050 = vmatpush.msra.mxu0 0.0
    %1051 = vmatpush.msra.mxu0 0.0
    %1052 = vmatpush.msra.mxu0 0.0
    %1053 = vmatpush.msra.mxu0 0.0
    %1054 = vmatpush.msra.mxu0 0.0
    %1055 = vmatpush.msra.mxu0 0.0
    %1056 = vmatpush.msra.mxu0 0.0
    %1057 = vmatpush.msra.mxu0 0.0
    %1058 = vmatpush.msra.mxu0 0.0
    %1059 = vmatpush.msra.mxu0 0.0
    %1060 = vmatpush.msra.mxu0 0.0
    %1061 = vmatpush.msra.mxu0 0.0
    %1062 = vmatpush.msra.mxu0 0.0
    %1063 = vmatpush.msra.mxu0 0.0
    %1064 = vmatpush.msra.mxu0 %v119
    %1065 = vmatpush.msra.mxu0 %v116
    %1066 = vmatmul.f32.gmra.mxu0 %v1048
    %v1067 = vpop.f32.mrf.mxu0
    %v1068 = vadd.f32 0.0, %v1067
    %1069 = vdwg.mxu0
    %1071 = vrot.lane.b32.xlu0 %v1068, 16
    %v1072 = vpop.permute.xlu0 %1071
    %v1074 = vadd.f32 %v1021, %v1072
    %v1075 = vmax.f32 %v1074, 0.0
    %1077 = vrot.lane.b32.xlu0 %v1075, 112
    %v1078 = vpop.permute.xlu0 %1077
    %v1079 = vsel %vm61, %v1078, 0
    %1081 = vmatpush.msra.mxu0 0.0
    %1082 = vmatpush.msra.mxu0 0.0
    %1083 = vmatpush.msra.mxu0 0.0
    %1084 = vmatpush.msra.mxu0 0.0
    %1085 = vmatpush.msra.mxu0 0.0
    %1086 = vmatpush.msra.mxu0 0.0
    %1087 = vmatpush.msra.mxu0 0.0
    %1088 = vmatpush.msra.mxu0 0.0
    %1089 = vmatpush.msra.mxu0 0.0
    %1090 = vmatpush.msra.mxu0 0.0
    %1091 = vmatpush.msra.mxu0 0.0
    %1092 = vmatpush.msra.mxu0 0.0
    %1093 = vmatpush.msra.mxu0 %v134
    %1094 = vmatpush.msra.mxu0 %v133
    %1095 = vmatpush.msra.mxu0 %v132
    %1096 = vmatpush.msra.mxu0 %v131
    %1097 = vmatmul.f32.gmra.mxu0 %v1079
    %v1098 = vpop.f32.mrf.mxu0
    %v1099 = vadd.f32 %v135, %v1098
    %1100 = vdwg.mxu0
    %1102 = vrot.lane.b32.xlu0 %v955, 112
    %v1103 = vpop.permute.xlu0 %1102
    %v1105 = vadd.f32 %v1099, %v1103
    %v1106 = vxor.u32 %v1105, 2147483648
    %v1107 = vmul.f32 %v1106, 1.442695
    %v1108 = vpow.pop %v1107
    %v1109 = vadd.f32 %v1108, 1.0
    %v1110 = vrcp.pop %v1109
    %v1111 = vmul.f32 %v1109, %v1110
    %v1112 = vsub.f32 1.0, %v1111
    %v1113 = vmul.f32 %v1110, %v1112
    %v1114 = vadd.f32 %v1110, %v1113
    %vm1115 = vweird.f32 %v1109
    %vm1116 = vweird.f32 %v1110
    %vm1117 = vmor %vm1115, %vm1116
    %v1118 = vsel %vm1117, %v1110, %v1114
    %v1119 = vand.u32 2147483647, %v1109
    %vm1120 = vcmp.eq.f32.partialorder %v1119, 8.507059e+37
    %v1121 = vand.u32 %v1109, 2147483648
    %v1122 = vor.u32 1.1754944e-38, %v1121
    %v1123 = vsel %vm1120, %v1122, %v1118
    %v1124 = vmul.f32 1.0, %v1123
    %1125 = vrot.lane.b32.xlu0 %v955, 48
    %v1126 = vpop.permute.xlu0 %1125
    %v1128 = vmul.f32 %v1124, %v1126
    %1130 = vrot.lane.b32.xlu0 %v1128, 64
    %v1131 = vpop.permute.xlu0 %1130
    %v1133 = vadd.f32 %v1099, %v1131
    %v1134 = vtanh.pop %v1133
    %v1135 = vsub.f32 1.0, %v1124
    %1137 = vrot.lane.b32.xlu0 %v1134, 96
    %v1138 = vpop.permute.xlu0 %1137
    %v1140 = vmul.f32 %v1135, %v1138
    %v1141 = vmul.f32 %v1124, %v931
    %v1142 = vadd.f32 %v1140, %v1141
    %1144 = vrot.lane.b32.xlu0 %v1142, 96
    %v1145 = vpop.permute.xlu0 %1144
    %v1146 = vsel %vm61, %v1145, 0
    %1148 = vmatpush.msra.mxu0 0.0
    %1149 = vmatpush.msra.mxu0 0.0
    %1150 = vmatpush.msra.mxu0 0.0
    %1151 = vmatpush.msra.mxu0 0.0
    %1152 = vmatpush.msra.mxu0 0.0
    %1153 = vmatpush.msra.mxu0 0.0
    %1154 = vmatpush.msra.mxu0 0.0
    %1155 = vmatpush.msra.mxu0 0.0
    %1156 = vmatpush.msra.mxu0 0.0
    %1157 = vmatpush.msra.mxu0 0.0
    %1158 = vmatpush.msra.mxu0 0.0
    %1159 = vmatpush.msra.mxu0 0.0
    %1160 = vmatpush.msra.mxu0 %v127
    %1161 = vmatpush.msra.mxu0 %v125
    %1162 = vmatpush.msra.mxu0 %v123
    %1163 = vmatpush.msra.mxu0 %v121
    %1164 = vmatmul.f32.gmra.mxu0 %v1146
    %v1165 = vpop.f32.mrf.mxu0
    %v1166 = vadd.f32 %v138, %v1165
    %1167 = vdwg.mxu0
    %1168 = vmatpush.msra.mxu0 0.0
    %1169 = vmatpush.msra.mxu0 0.0
    %1170 = vmatpush.msra.mxu0 0.0
    %1171 = vmatpush.msra.mxu0 0.0
    %1172 = vmatpush.msra.mxu0 0.0
    %1173 = vmatpush.msra.mxu0 0.0
    %1174 = vmatpush.msra.mxu0 0.0
    %1175 = vmatpush.msra.mxu0 0.0
    %1176 = vmatpush.msra.mxu0 0.0
    %1177 = vmatpush.msra.mxu0 0.0
    %1178 = vmatpush.msra.mxu0 0.0
    %1179 = vmatpush.msra.mxu0 0.0
    %1180 = vmatpush.msra.mxu0 %v128
    %1181 = vmatpush.msra.mxu0 %v126
    %1182 = vmatpush.msra.mxu0 %v124
    %1183 = vmatpush.msra.mxu0 %v122
    %1184 = vmatmul.f32.gmra.mxu0 %v1146
    %v1185 = vpop.f32.mrf.mxu0
    %v1186 = vadd.f32 %v294, %v1185
    %1187 = vdwg.mxu0
    %v1188 = vsel %vm338, %v1166, -inf
    %v1189 = vsel %vm340, %v1186, -inf
    %v1190 = vmax.f32 %v1188, %v1189
    %1191 = vmax.xlane.f32.xlu0 %v1190
    %v1192 = vpop.xlane.xlu0 %1191
    %v1193 = vsub.f32 %v1166, %v1192
    %v1194 = vsub.f32 %v1186, %v1192
    %v1195 = vmul.f32 %v1193, 1.442695
    %v1196 = vpow.pop %v1195
    %v1197 = vmul.f32 %v1194, 1.442695
    %v1198 = vpow.pop %v1197
    %1201 = vrot.lane.b32.xlu0 %v1196, 16
    %v1202 = vpop.permute.xlu0 %1201
    %1203 = vrot.lane.b32.xlu0 %v1198, 16
    %v1204 = vpop.permute.xlu0 %1203
    %v1205 = vsel %vm190, %v1202, %v1204
    %v1207 = vsel %vm359, %v1205, 0.0
    %1208 = vadd.xlane.f32.xlu0 %v1207
    %v1209 = vpop.xlane.xlu0 %1208
    %v1210 = vlog2.pop %v1209
    %v1211 = vmul.f32 %v1210, 0.6931472
    %v1212 = vsub.f32 %v1193, %v1211
    %v1213 = vsub.f32 %v1194, %v1211
    %1216 = vrot.lane.b32.xlu0 %v1212, 16
    %v1217 = vpop.permute.xlu0 %1216
    %1218 = vrot.lane.b32.xlu0 %v1213, 16
    %v1219 = vpop.permute.xlu0 %1218
    %v1220 = vsel %vm190, %v1217, %v1219
    %1222 = vrot.lane.b32.xlu0 %v1142, 32
    %v1223 = vpop.permute.xlu0 %1222
    %1225 = vrot.lane.b32.xlu0 %v1046, 96
    %v1226 = vpop.permute.xlu0 %1225
    %v1228 = vsel %vm381, %v1220, %v1223
    %v1229 = vsel %vm383, %v1228, %v1226
    %v1230 = vsel %vm385, %v1229, 0.0
    %1231 = vst [vmem:[#allocation9 + $0x4] sm:$0x1] %v1230
    %v1232 = vld [vmem:[#allocation3 + $0x5] sm:$0x1]
    %v1233 = vadd.f32 %v1232, %v1166
    %v1234 = vsel %vm165, %v1233, -inf
    %1235 = vmax.xlane.f32.xlu0 %v1234
    %v1236 = vpop.xlane.xlu0 %1235
    %v1237 = vsub.f32 %v1233, %v1236
    %v1238 = vmul.f32 %v1237, 1.442695
    %v1239 = vpow.pop %v1238
    %v1240 = vsel %vm165, %v1239, 0.0
    %1241 = vadd.xlane.f32.xlu0 %v1240
    %v1242 = vpop.xlane.xlu0 %1241
    %v1243 = vrcp.pop %v1242
    %v1244 = vmul.f32 %v1242, %v1243
    %v1245 = vsub.f32 1.0, %v1244
    %v1246 = vmul.f32 %v1243, %v1245
    %v1247 = vadd.f32 %v1243, %v1246
    %vm1248 = vweird.f32 %v1242
    %vm1249 = vweird.f32 %v1243
    %vm1250 = vmor %vm1248, %vm1249
    %v1251 = vsel %vm1250, %v1243, %v1247
    %v1252 = vand.u32 2147483647, %v1242
    %vm1253 = vcmp.eq.f32.partialorder %v1252, 8.507059e+37
    %v1254 = vand.u32 %v1242, 2147483648
    %v1255 = vor.u32 1.1754944e-38, %v1254
    %v1256 = vsel %vm1253, %v1255, %v1251
    %v1257 = vmul.f32 %v1239, %v1256
    %v1259 = vsel %vm190, %v1257, 0
    %1261 = vmatpush.msra.mxu0 0.0
    %1262 = vmatpush.msra.mxu0 0.0
    %1263 = vmatpush.msra.mxu0 0.0
    %1264 = vmatpush.msra.mxu0 0.0
    %1265 = vmatpush.msra.mxu0 0.0
    %1266 = vmatpush.msra.mxu0 0.0
    %1267 = vmatpush.msra.mxu0 0.0
    %1268 = vmatpush.msra.mxu0 0.0
    %1269 = vmatpush.msra.mxu0 0.0
    %1270 = vmatpush.msra.mxu0 0.0
    %1271 = vmatpush.msra.mxu0 0.0
    %1272 = vmatpush.msra.mxu0 0.0
    %1273 = vmatpush.msra.mxu0 0.0
    %1274 = vmatpush.msra.mxu0 0.0
    %1275 = vmatpush.msra.mxu0 %v119
    %1276 = vmatpush.msra.mxu0 %v116
    %1277 = vmatmul.f32.gmra.mxu0 %v1259
    %v1278 = vpop.f32.mrf.mxu0
    %v1279 = vadd.f32 0.0, %v1278
    %1280 = vdwg.mxu0
    %1282 = vrot.lane.b32.xlu0 %v1279, 16
    %v1283 = vpop.permute.xlu0 %1282
    %v1285 = vadd.f32 %v1232, %v1283
    %v1286 = vmax.f32 %v1285, 0.0
    %1288 = vrot.lane.b32.xlu0 %v1286, 112
    %v1289 = vpop.permute.xlu0 %1288
    %v1290 = vsel %vm61, %v1289, 0
    %1292 = vmatpush.msra.mxu0 0.0
    %1293 = vmatpush.msra.mxu0 0.0
    %1294 = vmatpush.msra.mxu0 0.0
    %1295 = vmatpush.msra.mxu0 0.0
    %1296 = vmatpush.msra.mxu0 0.0
    %1297 = vmatpush.msra.mxu0 0.0
    %1298 = vmatpush.msra.mxu0 0.0
    %1299 = vmatpush.msra.mxu0 0.0
    %1300 = vmatpush.msra.mxu0 0.0
    %1301 = vmatpush.msra.mxu0 0.0
    %1302 = vmatpush.msra.mxu0 0.0
    %1303 = vmatpush.msra.mxu0 0.0
    %1304 = vmatpush.msra.mxu0 %v134
    %1305 = vmatpush.msra.mxu0 %v133
    %1306 = vmatpush.msra.mxu0 %v132
    %1307 = vmatpush.msra.mxu0 %v131
    %1308 = vmatmul.f32.gmra.mxu0 %v1290
    %v1309 = vpop.f32.mrf.mxu0
    %v1310 = vadd.f32 %v135, %v1309
    %1311 = vdwg.mxu0
    %1313 = vrot.lane.b32.xlu0 %v1166, 112
    %v1314 = vpop.permute.xlu0 %1313
    %v1316 = vadd.f32 %v1310, %v1314
    %v1317 = vxor.u32 %v1316, 2147483648
    %v1318 = vmul.f32 %v1317, 1.442695
    %v1319 = vpow.pop %v1318
    %v1320 = vadd.f32 %v1319, 1.0
    %v1321 = vrcp.pop %v1320
    %v1322 = vmul.f32 %v1320, %v1321
    %v1323 = vsub.f32 1.0, %v1322
    %v1324 = vmul.f32 %v1321, %v1323
    %v1325 = vadd.f32 %v1321, %v1324
    %vm1326 = vweird.f32 %v1320
    %vm1327 = vweird.f32 %v1321
    %vm1328 = vmor %vm1326, %vm1327
    %v1329 = vsel %vm1328, %v1321, %v1325
    %v1330 = vand.u32 2147483647, %v1320
    %vm1331 = vcmp.eq.f32.partialorder %v1330, 8.507059e+37
    %v1332 = vand.u32 %v1320, 2147483648
    %v1333 = vor.u32 1.1754944e-38, %v1332
    %v1334 = vsel %vm1331, %v1333, %v1329
    %v1335 = vmul.f32 1.0, %v1334
    %1336 = vrot.lane.b32.xlu0 %v1166, 48
    %v1337 = vpop.permute.xlu0 %1336
    %v1339 = vmul.f32 %v1335, %v1337
    %1341 = vrot.lane.b32.xlu0 %v1339, 64
    %v1342 = vpop.permute.xlu0 %1341
    %v1344 = vadd.f32 %v1310, %v1342
    %v1345 = vtanh.pop %v1344
    %v1346 = vsub.f32 1.0, %v1335
    %1348 = vrot.lane.b32.xlu0 %v1345, 96
    %v1349 = vpop.permute.xlu0 %1348
    %v1351 = vmul.f32 %v1346, %v1349
    %v1352 = vmul.f32 %v1335, %v1142
    %v1353 = vadd.f32 %v1351, %v1352
    %1355 = vrot.lane.b32.xlu0 %v1353, 96
    %v1356 = vpop.permute.xlu0 %1355
    %v1357 = vsel %vm61, %v1356, 0
    %1359 = vmatpush.msra.mxu0 0.0
    %1360 = vmatpush.msra.mxu0 0.0
    %1361 = vmatpush.msra.mxu0 0.0
    %1362 = vmatpush.msra.mxu0 0.0
    %1363 = vmatpush.msra.mxu0 0.0
    %1364 = vmatpush.msra.mxu0 0.0
    %1365 = vmatpush.msra.mxu0 0.0
    %1366 = vmatpush.msra.mxu0 0.0
    %1367 = vmatpush.msra.mxu0 0.0
    %1368 = vmatpush.msra.mxu0 0.0
    %1369 = vmatpush.msra.mxu0 0.0
    %1370 = vmatpush.msra.mxu0 0.0
    %1371 = vmatpush.msra.mxu0 %v127
    %1372 = vmatpush.msra.mxu0 %v125
    %1373 = vmatpush.msra.mxu0 %v123
    %1374 = vmatpush.msra.mxu0 %v121
    %1375 = vmatmul.f32.gmra.mxu0 %v1357
    %v1376 = vpop.f32.mrf.mxu0
    %v1377 = vadd.f32 %v138, %v1376
    %1378 = vdwg.mxu0
    %1379 = vmatpush.msra.mxu0 0.0
    %1380 = vmatpush.msra.mxu0 0.0
    %1381 = vmatpush.msra.mxu0 0.0
    %1382 = vmatpush.msra.mxu0 0.0
    %1383 = vmatpush.msra.mxu0 0.0
    %1384 = vmatpush.msra.mxu0 0.0
    %1385 = vmatpush.msra.mxu0 0.0
    %1386 = vmatpush.msra.mxu0 0.0
    %1387 = vmatpush.msra.mxu0 0.0
    %1388 = vmatpush.msra.mxu0 0.0
    %1389 = vmatpush.msra.mxu0 0.0
    %1390 = vmatpush.msra.mxu0 0.0
    %1391 = vmatpush.msra.mxu0 %v128
    %1392 = vmatpush.msra.mxu0 %v126
    %1393 = vmatpush.msra.mxu0 %v124
    %1394 = vmatpush.msra.mxu0 %v122
    %1395 = vmatmul.f32.gmra.mxu0 %v1357
    %v1396 = vpop.f32.mrf.mxu0
    %v1397 = vadd.f32 %v294, %v1396
    %1398 = vdwg.mxu0
    %v1399 = vsel %vm338, %v1377, -inf
    %v1400 = vsel %vm340, %v1397, -inf
    %v1401 = vmax.f32 %v1399, %v1400
    %1402 = vmax.xlane.f32.xlu0 %v1401
    %v1403 = vpop.xlane.xlu0 %1402
    %v1404 = vsub.f32 %v1377, %v1403
    %v1405 = vsub.f32 %v1397, %v1403
    %v1406 = vmul.f32 %v1404, 1.442695
    %v1407 = vpow.pop %v1406
    %v1408 = vmul.f32 %v1405, 1.442695
    %v1409 = vpow.pop %v1408
    %1412 = vrot.lane.b32.xlu0 %v1407, 16
    %v1413 = vpop.permute.xlu0 %1412
    %1414 = vrot.lane.b32.xlu0 %v1409, 16
    %v1415 = vpop.permute.xlu0 %1414
    %v1416 = vsel %vm190, %v1413, %v1415
    %v1418 = vsel %vm359, %v1416, 0.0
    %1419 = vadd.xlane.f32.xlu0 %v1418
    %v1420 = vpop.xlane.xlu0 %1419
    %v1421 = vlog2.pop %v1420
    %v1422 = vmul.f32 %v1421, 0.6931472
    %v1423 = vsub.f32 %v1404, %v1422
    %v1424 = vsub.f32 %v1405, %v1422
    %1427 = vrot.lane.b32.xlu0 %v1423, 16
    %v1428 = vpop.permute.xlu0 %1427
    %1429 = vrot.lane.b32.xlu0 %v1424, 16
    %v1430 = vpop.permute.xlu0 %1429
    %v1431 = vsel %vm190, %v1428, %v1430
    %1433 = vrot.lane.b32.xlu0 %v1353, 32
    %v1434 = vpop.permute.xlu0 %1433
    %1436 = vrot.lane.b32.xlu0 %v1257, 96
    %v1437 = vpop.permute.xlu0 %1436
    %v1439 = vsel %vm381, %v1431, %v1434
    %v1440 = vsel %vm383, %v1439, %v1437
    %v1441 = vsel %vm385, %v1440, 0.0
    %1442 = vst [vmem:[#allocation9 + $0x5] sm:$0x1] %v1441
    %v1443 = vld [vmem:[#allocation3 + $0x6] sm:$0x1]
    %v1444 = vadd.f32 %v1443, %v1377
    %v1445 = vsel %vm165, %v1444, -inf
    %1446 = vmax.xlane.f32.xlu0 %v1445
    %v1447 = vpop.xlane.xlu0 %1446
    %v1448 = vsub.f32 %v1444, %v1447
    %v1449 = vmul.f32 %v1448, 1.442695
    %v1450 = vpow.pop %v1449
    %v1451 = vsel %vm165, %v1450, 0.0
    %1452 = vadd.xlane.f32.xlu0 %v1451
    %v1453 = vpop.xlane.xlu0 %1452
    %v1454 = vrcp.pop %v1453
    %v1455 = vmul.f32 %v1453, %v1454
    %v1456 = vsub.f32 1.0, %v1455
    %v1457 = vmul.f32 %v1454, %v1456
    %v1458 = vadd.f32 %v1454, %v1457
    %vm1459 = vweird.f32 %v1453
    %vm1460 = vweird.f32 %v1454
    %vm1461 = vmor %vm1459, %vm1460
    %v1462 = vsel %vm1461, %v1454, %v1458
    %v1463 = vand.u32 2147483647, %v1453
    %vm1464 = vcmp.eq.f32.partialorder %v1463, 8.507059e+37
    %v1465 = vand.u32 %v1453, 2147483648
    %v1466 = vor.u32 1.1754944e-38, %v1465
    %v1467 = vsel %vm1464, %v1466, %v1462
    %v1468 = vmul.f32 %v1450, %v1467
    %v1470 = vsel %vm190, %v1468, 0
    %1472 = vmatpush.msra.mxu0 0.0
    %1473 = vmatpush.msra.mxu0 0.0
    %1474 = vmatpush.msra.mxu0 0.0
    %1475 = vmatpush.msra.mxu0 0.0
    %1476 = vmatpush.msra.mxu0 0.0
    %1477 = vmatpush.msra.mxu0 0.0
    %1478 = vmatpush.msra.mxu0 0.0
    %1479 = vmatpush.msra.mxu0 0.0
    %1480 = vmatpush.msra.mxu0 0.0
    %1481 = vmatpush.msra.mxu0 0.0
    %1482 = vmatpush.msra.mxu0 0.0
    %1483 = vmatpush.msra.mxu0 0.0
    %1484 = vmatpush.msra.mxu0 0.0
    %1485 = vmatpush.msra.mxu0 0.0
    %1486 = vmatpush.msra.mxu0 %v119
    %1487 = vmatpush.msra.mxu0 %v116
    %1488 = vmatmul.f32.gmra.mxu0 %v1470
    %v1489 = vpop.f32.mrf.mxu0
    %v1490 = vadd.f32 0.0, %v1489
    %1491 = vdwg.mxu0
    %1493 = vrot.lane.b32.xlu0 %v1490, 16
    %v1494 = vpop.permute.xlu0 %1493
    %v1496 = vadd.f32 %v1443, %v1494
    %v1497 = vmax.f32 %v1496, 0.0
    %1499 = vrot.lane.b32.xlu0 %v1497, 112
    %v1500 = vpop.permute.xlu0 %1499
    %v1501 = vsel %vm61, %v1500, 0
    %1503 = vmatpush.msra.mxu0 0.0
    %1504 = vmatpush.msra.mxu0 0.0
    %1505 = vmatpush.msra.mxu0 0.0
    %1506 = vmatpush.msra.mxu0 0.0
    %1507 = vmatpush.msra.mxu0 0.0
    %1508 = vmatpush.msra.mxu0 0.0
    %1509 = vmatpush.msra.mxu0 0.0
    %1510 = vmatpush.msra.mxu0 0.0
    %1511 = vmatpush.msra.mxu0 0.0
    %1512 = vmatpush.msra.mxu0 0.0
    %1513 = vmatpush.msra.mxu0 0.0
    %1514 = vmatpush.msra.mxu0 0.0
    %1515 = vmatpush.msra.mxu0 %v134
    %1516 = vmatpush.msra.mxu0 %v133
    %1517 = vmatpush.msra.mxu0 %v132
    %1518 = vmatpush.msra.mxu0 %v131
    %1519 = vmatmul.f32.gmra.mxu0 %v1501
    %v1520 = vpop.f32.mrf.mxu0
    %v1521 = vadd.f32 %v135, %v1520
    %1522 = vdwg.mxu0
    %1524 = vrot.lane.b32.xlu0 %v1377, 112
    %v1525 = vpop.permute.xlu0 %1524
    %v1527 = vadd.f32 %v1521, %v1525
    %v1528 = vxor.u32 %v1527, 2147483648
    %v1529 = vmul.f32 %v1528, 1.442695
    %v1530 = vpow.pop %v1529
    %v1531 = vadd.f32 %v1530, 1.0
    %v1532 = vrcp.pop %v1531
    %v1533 = vmul.f32 %v1531, %v1532
    %v1534 = vsub.f32 1.0, %v1533
    %v1535 = vmul.f32 %v1532, %v1534
    %v1536 = vadd.f32 %v1532, %v1535
    %vm1537 = vweird.f32 %v1531
    %vm1538 = vweird.f32 %v1532
    %vm1539 = vmor %vm1537, %vm1538
    %v1540 = vsel %vm1539, %v1532, %v1536
    %v1541 = vand.u32 2147483647, %v1531
    %vm1542 = vcmp.eq.f32.partialorder %v1541, 8.507059e+37
    %v1543 = vand.u32 %v1531, 2147483648
    %v1544 = vor.u32 1.1754944e-38, %v1543
    %v1545 = vsel %vm1542, %v1544, %v1540
    %v1546 = vmul.f32 1.0, %v1545
    %1547 = vrot.lane.b32.xlu0 %v1377, 48
    %v1548 = vpop.permute.xlu0 %1547
    %v1550 = vmul.f32 %v1546, %v1548
    %1552 = vrot.lane.b32.xlu0 %v1550, 64
    %v1553 = vpop.permute.xlu0 %1552
    %v1555 = vadd.f32 %v1521, %v1553
    %v1556 = vtanh.pop %v1555
    %v1557 = vsub.f32 1.0, %v1546
    %1559 = vrot.lane.b32.xlu0 %v1556, 96
    %v1560 = vpop.permute.xlu0 %1559
    %v1562 = vmul.f32 %v1557, %v1560
    %v1563 = vmul.f32 %v1546, %v1353
    %v1564 = vadd.f32 %v1562, %v1563
    %1566 = vrot.lane.b32.xlu0 %v1564, 96
    %v1567 = vpop.permute.xlu0 %1566
    %v1568 = vsel %vm61, %v1567, 0
    %1570 = vmatpush.msra.mxu0 0.0
    %1571 = vmatpush.msra.mxu0 0.0
    %1572 = vmatpush.msra.mxu0 0.0
    %1573 = vmatpush.msra.mxu0 0.0
    %1574 = vmatpush.msra.mxu0 0.0
    %1575 = vmatpush.msra.mxu0 0.0
    %1576 = vmatpush.msra.mxu0 0.0
    %1577 = vmatpush.msra.mxu0 0.0
    %1578 = vmatpush.msra.mxu0 0.0
    %1579 = vmatpush.msra.mxu0 0.0
    %1580 = vmatpush.msra.mxu0 0.0
    %1581 = vmatpush.msra.mxu0 0.0
    %1582 = vmatpush.msra.mxu0 %v127
    %1583 = vmatpush.msra.mxu0 %v125
    %1584 = vmatpush.msra.mxu0 %v123
    %1585 = vmatpush.msra.mxu0 %v121
    %1586 = vmatmul.f32.gmra.mxu0 %v1568
    %v1587 = vpop.f32.mrf.mxu0
    %v1588 = vadd.f32 %v138, %v1587
    %1589 = vdwg.mxu0
    %1590 = vmatpush.msra.mxu0 0.0
    %1591 = vmatpush.msra.mxu0 0.0
    %1592 = vmatpush.msra.mxu0 0.0
    %1593 = vmatpush.msra.mxu0 0.0
    %1594 = vmatpush.msra.mxu0 0.0
    %1595 = vmatpush.msra.mxu0 0.0
    %1596 = vmatpush.msra.mxu0 0.0
    %1597 = vmatpush.msra.mxu0 0.0
    %1598 = vmatpush.msra.mxu0 0.0
    %1599 = vmatpush.msra.mxu0 0.0
    %1600 = vmatpush.msra.mxu0 0.0
    %1601 = vmatpush.msra.mxu0 0.0
    %1602 = vmatpush.msra.mxu0 %v128
    %1603 = vmatpush.msra.mxu0 %v126
    %1604 = vmatpush.msra.mxu0 %v124
    %1605 = vmatpush.msra.mxu0 %v122
    %1606 = vmatmul.f32.gmra.mxu0 %v1568
    %v1607 = vpop.f32.mrf.mxu0
    %v1608 = vadd.f32 %v294, %v1607
    %1609 = vdwg.mxu0
    %v1610 = vsel %vm338, %v1588, -inf
    %v1611 = vsel %vm340, %v1608, -inf
    %v1612 = vmax.f32 %v1610, %v1611
    %1613 = vmax.xlane.f32.xlu0 %v1612
    %v1614 = vpop.xlane.xlu0 %1613
    %v1615 = vsub.f32 %v1588, %v1614
    %v1616 = vsub.f32 %v1608, %v1614
    %v1617 = vmul.f32 %v1615, 1.442695
    %v1618 = vpow.pop %v1617
    %v1619 = vmul.f32 %v1616, 1.442695
    %v1620 = vpow.pop %v1619
    %1623 = vrot.lane.b32.xlu0 %v1618, 16
    %v1624 = vpop.permute.xlu0 %1623
    %1625 = vrot.lane.b32.xlu0 %v1620, 16
    %v1626 = vpop.permute.xlu0 %1625
    %v1627 = vsel %vm190, %v1624, %v1626
    %v1629 = vsel %vm359, %v1627, 0.0
    %1630 = vadd.xlane.f32.xlu0 %v1629
    %v1631 = vpop.xlane.xlu0 %1630
    %v1632 = vlog2.pop %v1631
    %v1633 = vmul.f32 %v1632, 0.6931472
    %v1634 = vsub.f32 %v1615, %v1633
    %v1635 = vsub.f32 %v1616, %v1633
    %1638 = vrot.lane.b32.xlu0 %v1634, 16
    %v1639 = vpop.permute.xlu0 %1638
    %1640 = vrot.lane.b32.xlu0 %v1635, 16
    %v1641 = vpop.permute.xlu0 %1640
    %v1642 = vsel %vm190, %v1639, %v1641
    %1644 = vrot.lane.b32.xlu0 %v1564, 32
    %v1645 = vpop.permute.xlu0 %1644
    %1647 = vrot.lane.b32.xlu0 %v1468, 96
    %v1648 = vpop.permute.xlu0 %1647
    %v1650 = vsel %vm381, %v1642, %v1645
    %v1651 = vsel %vm383, %v1650, %v1648
    %v1652 = vsel %vm385, %v1651, 0.0
    %1653 = vst [vmem:[#allocation9 + $0x6] sm:$0x1] %v1652
    %v1654 = vld [vmem:[#allocation3 + $0x7] sm:$0x1]
    %v1655 = vadd.f32 %v1654, %v1588
    %v1656 = vsel %vm165, %v1655, -inf
    %1657 = vmax.xlane.f32.xlu0 %v1656
    %v1658 = vpop.xlane.xlu0 %1657
    %v1659 = vsub.f32 %v1655, %v1658
    %v1660 = vmul.f32 %v1659, 1.442695
    %v1661 = vpow.pop %v1660
    %v1662 = vsel %vm165, %v1661, 0.0
    %1663 = vadd.xlane.f32.xlu0 %v1662
    %v1664 = vpop.xlane.xlu0 %1663
    %v1665 = vrcp.pop %v1664
    %v1666 = vmul.f32 %v1664, %v1665
    %v1667 = vsub.f32 1.0, %v1666
    %v1668 = vmul.f32 %v1665, %v1667
    %v1669 = vadd.f32 %v1665, %v1668
    %vm1670 = vweird.f32 %v1664
    %vm1671 = vweird.f32 %v1665
    %vm1672 = vmor %vm1670, %vm1671
    %v1673 = vsel %vm1672, %v1665, %v1669
    %v1674 = vand.u32 2147483647, %v1664
    %vm1675 = vcmp.eq.f32.partialorder %v1674, 8.507059e+37
    %v1676 = vand.u32 %v1664, 2147483648
    %v1677 = vor.u32 1.1754944e-38, %v1676
    %v1678 = vsel %vm1675, %v1677, %v1673
    %v1679 = vmul.f32 %v1661, %v1678
    %v1681 = vsel %vm190, %v1679, 0
    %1683 = vmatpush.msra.mxu0 0.0
    %1684 = vmatpush.msra.mxu0 0.0
    %1685 = vmatpush.msra.mxu0 0.0
    %1686 = vmatpush.msra.mxu0 0.0
    %1687 = vmatpush.msra.mxu0 0.0
    %1688 = vmatpush.msra.mxu0 0.0
    %1689 = vmatpush.msra.mxu0 0.0
    %1690 = vmatpush.msra.mxu0 0.0
    %1691 = vmatpush.msra.mxu0 0.0
    %1692 = vmatpush.msra.mxu0 0.0
    %1693 = vmatpush.msra.mxu0 0.0
    %1694 = vmatpush.msra.mxu0 0.0
    %1695 = vmatpush.msra.mxu0 0.0
    %1696 = vmatpush.msra.mxu0 0.0
    %1697 = vmatpush.msra.mxu0 %v119
    %1698 = vmatpush.msra.mxu0 %v116
    %1699 = vmatmul.f32.gmra.mxu0 %v1681
    %v1700 = vpop.f32.mrf.mxu0
    %v1701 = vadd.f32 0.0, %v1700
    %1702 = vdwg.mxu0
    %1704 = vrot.lane.b32.xlu0 %v1701, 16
    %v1705 = vpop.permute.xlu0 %1704
    %v1707 = vadd.f32 %v1654, %v1705
    %v1708 = vmax.f32 %v1707, 0.0
    %1710 = vrot.lane.b32.xlu0 %v1708, 112
    %v1711 = vpop.permute.xlu0 %1710
    %v1712 = vsel %vm61, %v1711, 0
    %1714 = vmatpush.msra.mxu0 0.0
    %1715 = vmatpush.msra.mxu0 0.0
    %1716 = vmatpush.msra.mxu0 0.0
    %1717 = vmatpush.msra.mxu0 0.0
    %1718 = vmatpush.msra.mxu0 0.0
    %1719 = vmatpush.msra.mxu0 0.0
    %1720 = vmatpush.msra.mxu0 0.0
    %1721 = vmatpush.msra.mxu0 0.0
    %1722 = vmatpush.msra.mxu0 0.0
    %1723 = vmatpush.msra.mxu0 0.0
    %1724 = vmatpush.msra.mxu0 0.0
    %1725 = vmatpush.msra.mxu0 0.0
    %1726 = vmatpush.msra.mxu0 %v134
    %1727 = vmatpush.msra.mxu0 %v133
    %1728 = vmatpush.msra.mxu0 %v132
    %1729 = vmatpush.msra.mxu0 %v131
    %1730 = vmatmul.f32.gmra.mxu0 %v1712
    %v1731 = vpop.f32.mrf.mxu0
    %v1732 = vadd.f32 %v135, %v1731
    %1733 = vdwg.mxu0
    %1735 = vrot.lane.b32.xlu0 %v1588, 112
    %v1736 = vpop.permute.xlu0 %1735
    %v1738 = vadd.f32 %v1732, %v1736
    %v1739 = vxor.u32 %v1738, 2147483648
    %v1740 = vmul.f32 %v1739, 1.442695
    %v1741 = vpow.pop %v1740
    %v1742 = vadd.f32 %v1741, 1.0
    %v1743 = vrcp.pop %v1742
    %v1744 = vmul.f32 %v1742, %v1743
    %v1745 = vsub.f32 1.0, %v1744
    %v1746 = vmul.f32 %v1743, %v1745
    %v1747 = vadd.f32 %v1743, %v1746
    %vm1748 = vweird.f32 %v1742
    %vm1749 = vweird.f32 %v1743
    %vm1750 = vmor %vm1748, %vm1749
    %v1751 = vsel %vm1750, %v1743, %v1747
    %v1752 = vand.u32 2147483647, %v1742
    %vm1753 = vcmp.eq.f32.partialorder %v1752, 8.507059e+37
    %v1754 = vand.u32 %v1742, 2147483648
    %v1755 = vor.u32 1.1754944e-38, %v1754
    %v1756 = vsel %vm1753, %v1755, %v1751
    %v1757 = vmul.f32 1.0, %v1756
    %1758 = vrot.lane.b32.xlu0 %v1588, 48
    %v1759 = vpop.permute.xlu0 %1758
    %v1761 = vmul.f32 %v1757, %v1759
    %1763 = vrot.lane.b32.xlu0 %v1761, 64
    %v1764 = vpop.permute.xlu0 %1763
    %v1766 = vadd.f32 %v1732, %v1764
    %v1767 = vtanh.pop %v1766
    %v1768 = vsub.f32 1.0, %v1757
    %1770 = vrot.lane.b32.xlu0 %v1767, 96
    %v1771 = vpop.permute.xlu0 %1770
    %v1773 = vmul.f32 %v1768, %v1771
    %v1774 = vmul.f32 %v1757, %v1564
    %v1775 = vadd.f32 %v1773, %v1774
    %1777 = vrot.lane.b32.xlu0 %v1775, 96
    %v1778 = vpop.permute.xlu0 %1777
    %v1779 = vsel %vm61, %v1778, 0
    %1781 = vmatpush.msra.mxu0 0.0
    %1782 = vmatpush.msra.mxu0 0.0
    %1783 = vmatpush.msra.mxu0 0.0
    %1784 = vmatpush.msra.mxu0 0.0
    %1785 = vmatpush.msra.mxu0 0.0
    %1786 = vmatpush.msra.mxu0 0.0
    %1787 = vmatpush.msra.mxu0 0.0
    %1788 = vmatpush.msra.mxu0 0.0
    %1789 = vmatpush.msra.mxu0 0.0
    %1790 = vmatpush.msra.mxu0 0.0
    %1791 = vmatpush.msra.mxu0 0.0
    %1792 = vmatpush.msra.mxu0 0.0
    %1793 = vmatpush.msra.mxu0 %v127
    %1794 = vmatpush.msra.mxu0 %v125
    %1795 = vmatpush.msra.mxu0 %v123
    %1796 = vmatpush.msra.mxu0 %v121
    %1797 = vmatmul.f32.gmra.mxu0 %v1779
    %v1798 = vpop.f32.mrf.mxu0
    %v1799 = vadd.f32 %v138, %v1798
    %1800 = vdwg.mxu0
    %1801 = vmatpush.msra.mxu0 0.0
    %1802 = vmatpush.msra.mxu0 0.0
    %1803 = vmatpush.msra.mxu0 0.0
    %1804 = vmatpush.msra.mxu0 0.0
    %1805 = vmatpush.msra.mxu0 0.0
    %1806 = vmatpush.msra.mxu0 0.0
    %1807 = vmatpush.msra.mxu0 0.0
    %1808 = vmatpush.msra.mxu0 0.0
    %1809 = vmatpush.msra.mxu0 0.0
    %1810 = vmatpush.msra.mxu0 0.0
    %1811 = vmatpush.msra.mxu0 0.0
    %1812 = vmatpush.msra.mxu0 0.0
    %1813 = vmatpush.msra.mxu0 %v128
    %1814 = vmatpush.msra.mxu0 %v126
    %1815 = vmatpush.msra.mxu0 %v124
    %1816 = vmatpush.msra.mxu0 %v122
    %1817 = vmatmul.f32.gmra.mxu0 %v1779
    %v1818 = vpop.f32.mrf.mxu0
    %v1819 = vadd.f32 %v294, %v1818
    %1820 = vdwg.mxu0
    %v1821 = vsel %vm338, %v1799, -inf
    %v1822 = vsel %vm340, %v1819, -inf
    %v1823 = vmax.f32 %v1821, %v1822
    %1824 = vmax.xlane.f32.xlu0 %v1823
    %v1825 = vpop.xlane.xlu0 %1824
    %v1826 = vsub.f32 %v1799, %v1825
    %v1827 = vsub.f32 %v1819, %v1825
    %v1828 = vmul.f32 %v1826, 1.442695
    %v1829 = vpow.pop %v1828
    %v1830 = vmul.f32 %v1827, 1.442695
    %v1831 = vpow.pop %v1830
    %1834 = vrot.lane.b32.xlu0 %v1829, 16
    %v1835 = vpop.permute.xlu0 %1834
    %1836 = vrot.lane.b32.xlu0 %v1831, 16
    %v1837 = vpop.permute.xlu0 %1836
    %v1838 = vsel %vm190, %v1835, %v1837
    %v1840 = vsel %vm359, %v1838, 0.0
    %1841 = vadd.xlane.f32.xlu0 %v1840
    %v1842 = vpop.xlane.xlu0 %1841
    %v1843 = vlog2.pop %v1842
    %v1844 = vmul.f32 %v1843, 0.6931472
    %v1845 = vsub.f32 %v1826, %v1844
    %v1846 = vsub.f32 %v1827, %v1844
    %1849 = vrot.lane.b32.xlu0 %v1845, 16
    %v1850 = vpop.permute.xlu0 %1849
    %1851 = vrot.lane.b32.xlu0 %v1846, 16
    %v1852 = vpop.permute.xlu0 %1851
    %v1853 = vsel %vm190, %v1850, %v1852
    %1855 = vrot.lane.b32.xlu0 %v1775, 32
    %v1856 = vpop.permute.xlu0 %1855
    %1858 = vrot.lane.b32.xlu0 %v1679, 96
    %v1859 = vpop.permute.xlu0 %1858
    %v1861 = vsel %vm381, %v1853, %v1856
    %v1862 = vsel %vm383, %v1861, %v1859
    %v1863 = vsel %vm385, %v1862, 0.0
    %1864 = vst [vmem:[#allocation9 + $0x7] sm:$0x1] %v1863
    // Predicated region
    $region29: #{tpu_custom_call.1} parent=1 // pred_check
      _
    $region30: #{tpu_custom_call.1} parent=1 // pred_check_branch
      %1866 = sbr.rel (0) target = $region32
    $region31: #{tpu_custom_call.1} parent=1 // pred_region
      %1868 = vsyncadd [#allocation8], 0
      %s1870 = sshll.u32 [#allocation9], 4
      %s1871 = int_to_ptr.vmem [resolvable:$true] %s1870
      %s1872 = sshll.u32 %s5, 4
      %s1873 = int_to_ptr.hbm [resolvable:$true] %s1872
      %1875 = dma.vmem_to_hbm [thread:$0]  %s1871, 128, %s1873, [#allocation8]
    $region32: #{tpu_custom_call.1} parent=1 // pred_fallthru
      _
    // Predicated region
    $region33: #{tpu_custom_call.1} parent=1 // pred_check
      _
    $region34: #{tpu_custom_call.1} parent=1 // pred_check_branch
      %1877 = sbr.rel (0) target = $region36
    $region35: #{tpu_custom_call.1} parent=1 // pred_region
      %1879 = dma.done [#allocation8], 128
    $region36: #{tpu_custom_call.1} parent=1 // pred_fallthru
      _
    %1880 = vsyncpa [#allocation7], 1
    %1881 = vsyncpa [#allocation8], 1

</llo_original>
